<compile_context>
chip_gen: v5e
topology: v5e:2x2
jax: 0.10.0
libtpu: 0.0.40
codegen_flags: <defaults>
</compile_context>

<pallas_src>
import functools
import math

import jax
import jax.numpy as jnp
from jax.experimental import pallas as pl
from jax.experimental.pallas import tpu as pltpu

_LATENT_PAD = 128  # latent dimension padded to one full lane group


# ---------------------------------------------------------------------------
# Fused VAE forward + VariationalInference kernel (one batch tile per step)
# ---------------------------------------------------------------------------
def _fused_vae_vi_kernel(x_ref, eps_z_ref, eps_x_ref,
                         w_enc_ref, b_enc_ref,
                         w_dec_mu_ref, w_dec_ls_ref,
                         b_dec_mu_ref, b_dec_ls_ref,
                         xhat_ref, mu_x_ref, ls_x_ref,
                         mu_z_ref, ls_z_ref, z_ref,
                         stats_ref):
    lp = _LATENT_PAD

    x = x_ref[...]                                   # (TB, D) f32
    x_bf = x.astype(jnp.bfloat16)                    # MXU operand

    # ---- encoder: fused mu || log_sigma heads, single MXU pass over K=D ----
    enc = (jnp.dot(x_bf, w_enc_ref[...], preferred_element_type=jnp.float32)
           + b_enc_ref[...])                         # (TB, 2*LP)
    mu_z = enc[:, :lp]                               # lane-aligned static slices
    log_sigma_z = enc[:, lp:]

    # z = qz.rsample(); padded latent lanes have zero weights/bias/noise -> z == 0
    eps_z = eps_z_ref[...]
    z = mu_z + jnp.exp(log_sigma_z) * eps_z

    # ---- decoder: px = N(mu_x, exp(log_sigma_x)), K = 128 (padded latent) ----
    z_bf = z.astype(jnp.bfloat16)
    mu_x = (jnp.dot(z_bf, w_dec_mu_ref[...], preferred_element_type=jnp.float32)
            + b_dec_mu_ref[...])
    log_sigma_x = (jnp.dot(z_bf, w_dec_ls_ref[...],
                           preferred_element_type=jnp.float32)
                   + b_dec_ls_ref[...])

    # xhat = px.rsample()
    xhat = mu_x + jnp.exp(log_sigma_x) * eps_x_ref[...]

    # Lane-dense model outputs (`outputs` dict of the original forward).
    xhat_ref[...] = xhat
    mu_x_ref[...] = mu_x
    ls_x_ref[...] = log_sigma_x
    mu_z_ref[...] = mu_z
    ls_z_ref[...] = log_sigma_z
    z_ref[...] = z

    # ---- VariationalInference per-row terms -------------------------------
    # log_px = -reduce(mse_loss(xhat, x))  (per-sample sum over all dims)
    diff = xhat - x
    log_px = -jnp.sum(diff * diff, axis=1, keepdims=True)             # (TB, 1)

    # kl = log_qz - log_pz with the exact identity (z - mu_z)/sigma_z == eps_z:
    #   log_qz = sum(-0.5*eps^2 - log_sigma_z - 0.5*log(2pi))
    #   log_pz = sum(-0.5*z^2              - 0.5*log(2pi))
    # constants cancel lane-for-lane (padded lanes contribute exactly zero).
    kl = jnp.sum(0.5 * z * z - 0.5 * eps_z * eps_z - log_sigma_z,
                 axis=1, keepdims=True)                               # (TB, 1)
    elbo = log_px - kl

    # One unmasked lane-dense stats store: lane 0 = elbo, 1 = log_px, 2 = kl.
    lane = jax.lax.broadcasted_iota(jnp.int32, stats_ref.shape, 1)
    stats_ref[...] = jnp.where(lane == 0, elbo,
                     jnp.where(lane == 1, log_px,
                     jnp.where(lane == 2, kl, 0.0)))


# ---------------------------------------------------------------------------
# Synthetic Gaussian VAE parameters (the `model` argument of forward)
# ---------------------------------------------------------------------------
def init_params(key, d_x, d_z):
    assert d_z <= _LATENT_PAD
    lp = _LATENT_PAD
    k1, k2, k3, k4 = jax.random.split(key, 4)
    s_e = 1.0 / math.sqrt(d_x)
    s_d = 1.0 / math.sqrt(d_z)

    # Fused encoder heads, latent columns zero-padded to 128 lanes each.
    w_enc = jnp.zeros((d_x, 2 * lp), jnp.float32)
    w_enc = w_enc.at[:, :d_z].set(jax.random.normal(k1, (d_x, d_z), jnp.float32) * s_e)
    w_enc = w_enc.at[:, lp:lp + d_z].set(
        jax.random.normal(k2, (d_x, d_z), jnp.float32) * s_e)

    w_dec_mu = jnp.zeros((lp, d_x), jnp.float32).at[:d_z].set(
        jax.random.normal(k3, (d_z, d_x), jnp.float32) * s_d)
    w_dec_ls = jnp.zeros((lp, d_x), jnp.float32).at[:d_z].set(
        jax.random.normal(k4, (d_z, d_x), jnp.float32) * s_d)

    return {
        "w_enc": w_enc.astype(jnp.bfloat16),
        "b_enc": jnp.zeros((1, 2 * lp), jnp.float32),
        "w_dec_mu": w_dec_mu.astype(jnp.bfloat16),
        "w_dec_ls": w_dec_ls.astype(jnp.bfloat16),
        "b_dec_mu": jnp.zeros((1, d_x), jnp.float32),
        "b_dec_ls": jnp.zeros((1, d_x), jnp.float32),
    }


# ---------------------------------------------------------------------------
# VariationalInference.forward equivalent
# ---------------------------------------------------------------------------
@functools.partial(jax.jit, static_argnames=("latent_dim",))
def variational_inference(params, x, rng, beta, *, latent_dim):
    lp = _LATENT_PAD
    b = x.shape[0]
    d = math.prod(x.shape[1:])

    # Batch tile: 256-row tiles fill a full MXU pass on v6e/v7x; small batches
    # use a 16-row multiple (full bf16 sublane packing).
    if b >= 256:
        tb = 256
    else:
        tb = max(16, ((b + 15) // 16) * 16)
    b_pad = ((b + tb - 1) // tb) * tb
    grid = (b_pad // tb,)

    x_flat = x.reshape(b, d).astype(jnp.float32)
    if b_pad != b:
        x_flat = jnp.pad(x_flat, ((0, b_pad - b), (0, 0)))

    # Standard-normal noise for the two rsample() calls (padded lanes/rows stay 0).
    kz, kx = jax.random.split(rng)
    eps_z = jnp.zeros((b_pad, lp), jnp.float32).at[:b, :latent_dim].set(
        jax.random.normal(kz, (b, latent_dim), jnp.float32))
    eps_x = jnp.zeros((b_pad, d), jnp.float32).at[:b].set(
        jax.random.normal(kx, (b, d), jnp.float32))

    row_spec_d = pl.BlockSpec((tb, d), lambda i: (i, 0))
    row_spec_l = pl.BlockSpec((tb, lp), lambda i: (i, 0))
    row_spec_s = pl.BlockSpec((tb, 128), lambda i: (i, 0))

    def full_spec(shape):
        return pl.BlockSpec(shape, lambda i: (0, 0))   # resident across grid

    out_shapes = (
        jax.ShapeDtypeStruct((b_pad, d), jnp.float32),    # xhat
        jax.ShapeDtypeStruct((b_pad, d), jnp.float32),    # mu_x
        jax.ShapeDtypeStruct((b_pad, d), jnp.float32),    # log_sigma_x
        jax.ShapeDtypeStruct((b_pad, lp), jnp.float32),   # mu_z
        jax.ShapeDtypeStruct((b_pad, lp), jnp.float32),   # log_sigma_z
        jax.ShapeDtypeStruct((b_pad, lp), jnp.float32),   # z
        jax.ShapeDtypeStruct((b_pad, 128), jnp.float32),  # per-row elbo|log_px|kl
    )
    in_specs = [
        row_spec_d,                                  # x
        row_spec_l,                                  # eps_z
        row_spec_d,                                  # eps_x
        full_spec(params["w_enc"].shape),
        full_spec(params["b_enc"].shape),
        full_spec(params["w_dec_mu"].shape),
        full_spec(params["w_dec_ls"].shape),
        full_spec(params["b_dec_mu"].shape),
        full_spec(params["b_dec_ls"].shape),
    ]
    out_specs = (row_spec_d, row_spec_d, row_spec_d,
                 row_spec_l, row_spec_l, row_spec_l, row_spec_s)

    cp_cls = getattr(pltpu, "CompilerParams", None)
    if cp_cls is None:
        cp_cls = getattr(pltpu, "TPUCompilerParams")
    compiler_params = cp_cls(dimension_semantics=("parallel",),
                             vmem_limit_bytes=64 * 1024 * 1024)

    (xhat_p, mu_x, ls_x, mu_z, ls_z, z, stats) = pl.pallas_call(
        _fused_vae_vi_kernel,
        grid=grid,
        out_shape=out_shapes,
        in_specs=in_specs,
        out_specs=out_specs,
        compiler_params=compiler_params,
    )(x_flat, eps_z, eps_x,
      params["w_enc"], params["b_enc"],
      params["w_dec_mu"], params["w_dec_ls"],
      params["b_dec_mu"], params["b_dec_ls"])

    elbo = stats[:b, 0]
    log_px = stats[:b, 1]
    kl = stats[:b, 2]

    # loss = -(log_px - beta * kl).mean()  (beta is a runtime scalar -> no recompile)
    beta = jnp.asarray(beta, jnp.float32)
    loss = -jnp.mean(log_px - beta * kl)

    xhat = xhat_p[:b].reshape(x.shape)

    # torch.no_grad() on diagnostics -> stop_gradient
    diagnostics = {
        "elbo": jax.lax.stop_gradient(elbo),
        "log_px": jax.lax.stop_gradient(log_px),
        "kl": jax.lax.stop_gradient(kl),
    }
    outputs = {
        "mu_x": mu_x[:b], "log_sigma_x": ls_x[:b],            # parameters of px
        "mu_z": mu_z[:b, :latent_dim],                        # parameters of qz
        "log_sigma_z": ls_z[:b, :latent_dim],
        "z": z[:b, :latent_dim],                              # pz is N(0, 1)
    }
    return loss, xhat, diagnostics, outputs


if __name__ == "__main__":
    key = jax.random.PRNGKey(0)
    B, C, H, W = 2, 4, 16, 16
    L = 32
    D = C * H * W

    kx, kp, kn = jax.random.split(key, 3)
    x = jax.random.normal(kx, (B, C, H, W), jnp.float32)
    params = init_params(kp, D, L)

    loss, xhat, diagnostics, outputs = variational_inference(
        params, x, kn, 1.0, latent_dim=L)

    jax.block_until_ready(loss)
    jax.block_until_ready(xhat)
    jax.block_until_ready(diagnostics["elbo"])

    assert loss.shape == ()
    assert xhat.shape == (B, C, H, W)
    assert diagnostics["elbo"].shape == (B,)
    assert diagnostics["log_px"].shape == (B,)
    assert diagnostics["kl"].shape == (B,)
    assert outputs["z"].shape == (B, L)
    assert outputs["mu_x"].shape == (B, D)
    assert bool(jnp.isfinite(loss))
    print("KERNEL_OK")
</pallas_src>

<mosaic_0001>
module attributes {stable_mosaic.version = 11 : i64} {
  func.func @_fused_vae_vi_kernel(%arg0: i32, %arg1: memref<16x1024xf32, #tpu.memory_space<vmem>>, %arg2: memref<16x128xf32, #tpu.memory_space<vmem>>, %arg3: memref<16x1024xf32, #tpu.memory_space<vmem>>, %arg4: memref<1024x256xbf16, #tpu.memory_space<vmem>>, %arg5: memref<1x256xf32, #tpu.memory_space<vmem>>, %arg6: memref<128x1024xbf16, #tpu.memory_space<vmem>>, %arg7: memref<128x1024xbf16, #tpu.memory_space<vmem>>, %arg8: memref<1x1024xf32, #tpu.memory_space<vmem>>, %arg9: memref<1x1024xf32, #tpu.memory_space<vmem>>, %arg10: memref<16x1024xf32, #tpu.memory_space<vmem>>, %arg11: memref<16x1024xf32, #tpu.memory_space<vmem>>, %arg12: memref<16x1024xf32, #tpu.memory_space<vmem>>, %arg13: memref<16x128xf32, #tpu.memory_space<vmem>>, %arg14: memref<16x128xf32, #tpu.memory_space<vmem>>, %arg15: memref<16x128xf32, #tpu.memory_space<vmem>>, %arg16: memref<16x128xf32, #tpu.memory_space<vmem>>) attributes {dimension_semantics = [#tpu.dimension_semantics<parallel>], iteration_bounds = array<i64: 1>, scalar_prefetch = 0 : i64, scratch_operands = 0 : i64, tpu.core_type = #tpu.core_type<tc>, window_params = [{transform_indices = @transform_0, window_bounds = array<i64: 16, 1024>}, {transform_indices = @transform_1, window_bounds = array<i64: 16, 128>}, {transform_indices = @transform_2, window_bounds = array<i64: 16, 1024>}, {pipeline_mode = #tpu.pipeline_mode<synchronous>, transform_indices = @transform_3, window_bounds = array<i64: 1024, 256>}, {pipeline_mode = #tpu.pipeline_mode<synchronous>, transform_indices = @transform_4, window_bounds = array<i64: 1, 256>}, {pipeline_mode = #tpu.pipeline_mode<synchronous>, transform_indices = @transform_5, window_bounds = array<i64: 128, 1024>}, {pipeline_mode = #tpu.pipeline_mode<synchronous>, transform_indices = @transform_6, window_bounds = array<i64: 128, 1024>}, {pipeline_mode = #tpu.pipeline_mode<synchronous>, transform_indices = @transform_7, window_bounds = array<i64: 1, 1024>}, {pipeline_mode = #tpu.pipeline_mode<synchronous>, transform_indices = @transform_8, window_bounds = array<i64: 1, 1024>}, {transform_indices = @transform_9, window_bounds = array<i64: 16, 1024>}, {transform_indices = @transform_10, window_bounds = array<i64: 16, 1024>}, {transform_indices = @transform_11, window_bounds = array<i64: 16, 1024>}, {transform_indices = @transform_12, window_bounds = array<i64: 16, 128>}, {transform_indices = @transform_13, window_bounds = array<i64: 16, 128>}, {transform_indices = @transform_14, window_bounds = array<i64: 16, 128>}, {transform_indices = @transform_15, window_bounds = array<i64: 16, 128>}]} {
    %c0 = arith.constant 0 : index
    %c0_0 = arith.constant 0 : index
    %0 = vector.load %arg1[%c0, %c0_0] : memref<16x1024xf32, #tpu.memory_space<vmem>>, vector<16x1024xf32>
    %1 = arith.truncf %0 : vector<16x1024xf32> to vector<16x1024xbf16>
    %c0_1 = arith.constant 0 : index
    %c0_2 = arith.constant 0 : index
    %2 = vector.load %arg4[%c0_1, %c0_2] : memref<1024x256xbf16, #tpu.memory_space<vmem>>, vector<1024x256xbf16>
    %cst = arith.constant dense<0.000000e+00> : vector<16x256xf32>
    %3 = tpu.matmul %1, %2, %cst {dimension_numbers = #tpu.dot_dimension_numbers<[1], [0], [0], [1], [0, 0, 1, 1], [], []>} : vector<16x1024xbf16>, vector<1024x256xbf16>, vector<16x256xf32> -> vector<16x256xf32>
    %c0_3 = arith.constant 0 : index
    %c0_4 = arith.constant 0 : index
    %4 = vector.load %arg5[%c0_3, %c0_4] : memref<1x256xf32, #tpu.memory_space<vmem>>, vector<1x256xf32>
    %5 = vector.broadcast %4 : vector<1x256xf32> to vector<16x256xf32>
    %6 = arith.addf %3, %5 : vector<16x256xf32>
    %7 = vector.extract_strided_slice %6 {offsets = [0, 0], sizes = [16, 128], strides = [1, 1]} : vector<16x256xf32> to vector<16x128xf32>
    %8 = vector.extract_strided_slice %6 {offsets = [0, 128], sizes = [16, 128], strides = [1, 1]} : vector<16x256xf32> to vector<16x128xf32>
    %c0_5 = arith.constant 0 : index
    %c0_6 = arith.constant 0 : index
    %9 = vector.load %arg2[%c0_5, %c0_6] : memref<16x128xf32, #tpu.memory_space<vmem>>, vector<16x128xf32>
    %10 = math.exp %8 : vector<16x128xf32>
    %11 = arith.mulf %10, %9 : vector<16x128xf32>
    %12 = arith.addf %7, %11 : vector<16x128xf32>
    %13 = arith.truncf %12 : vector<16x128xf32> to vector<16x128xbf16>
    %c0_7 = arith.constant 0 : index
    %c0_8 = arith.constant 0 : index
    %14 = vector.load %arg6[%c0_7, %c0_8] : memref<128x1024xbf16, #tpu.memory_space<vmem>>, vector<128x1024xbf16>
    %cst_9 = arith.constant dense<0.000000e+00> : vector<16x1024xf32>
    %15 = tpu.matmul %13, %14, %cst_9 {dimension_numbers = #tpu.dot_dimension_numbers<[1], [0], [0], [1], [0, 0, 1, 1], [], []>} : vector<16x128xbf16>, vector<128x1024xbf16>, vector<16x1024xf32> -> vector<16x1024xf32>
    %c0_10 = arith.constant 0 : index
    %c0_11 = arith.constant 0 : index
    %16 = vector.load %arg8[%c0_10, %c0_11] : memref<1x1024xf32, #tpu.memory_space<vmem>>, vector<1x1024xf32>
    %17 = vector.broadcast %16 : vector<1x1024xf32> to vector<16x1024xf32>
    %18 = arith.addf %15, %17 : vector<16x1024xf32>
    %c0_12 = arith.constant 0 : index
    %c0_13 = arith.constant 0 : index
    %19 = vector.load %arg7[%c0_12, %c0_13] : memref<128x1024xbf16, #tpu.memory_space<vmem>>, vector<128x1024xbf16>
    %cst_14 = arith.constant dense<0.000000e+00> : vector<16x1024xf32>
    %20 = tpu.matmul %13, %19, %cst_14 {dimension_numbers = #tpu.dot_dimension_numbers<[1], [0], [0], [1], [0, 0, 1, 1], [], []>} : vector<16x128xbf16>, vector<128x1024xbf16>, vector<16x1024xf32> -> vector<16x1024xf32>
    %c0_15 = arith.constant 0 : index
    %c0_16 = arith.constant 0 : index
    %21 = vector.load %arg9[%c0_15, %c0_16] : memref<1x1024xf32, #tpu.memory_space<vmem>>, vector<1x1024xf32>
    %22 = vector.broadcast %21 : vector<1x1024xf32> to vector<16x1024xf32>
    %23 = arith.addf %20, %22 : vector<16x1024xf32>
    %24 = math.exp %23 : vector<16x1024xf32>
    %c0_17 = arith.constant 0 : index
    %c0_18 = arith.constant 0 : index
    %25 = vector.load %arg3[%c0_17, %c0_18] : memref<16x1024xf32, #tpu.memory_space<vmem>>, vector<16x1024xf32>
    %26 = arith.mulf %24, %25 : vector<16x1024xf32>
    %27 = arith.addf %18, %26 : vector<16x1024xf32>
    %c0_19 = arith.constant 0 : index
    %c0_20 = arith.constant 0 : index
    %28 = vector.load %arg10[%c0_19, %c0_20] : memref<16x1024xf32, #tpu.memory_space<vmem>>, vector<16x1024xf32>
    tpu.vector_store %arg10[%c0_19, %c0_20], %27 {strides = array<i32>} : memref<16x1024xf32, #tpu.memory_space<vmem>>, vector<16x1024xf32>,
    %c0_21 = arith.constant 0 : index
    %c0_22 = arith.constant 0 : index
    %29 = vector.load %arg11[%c0_21, %c0_22] : memref<16x1024xf32, #tpu.memory_space<vmem>>, vector<16x1024xf32>
    tpu.vector_store %arg11[%c0_21, %c0_22], %18 {strides = array<i32>} : memref<16x1024xf32, #tpu.memory_space<vmem>>, vector<16x1024xf32>,
    %c0_23 = arith.constant 0 : index
    %c0_24 = arith.constant 0 : index
    %30 = vector.load %arg12[%c0_23, %c0_24] : memref<16x1024xf32, #tpu.memory_space<vmem>>, vector<16x1024xf32>
    tpu.vector_store %arg12[%c0_23, %c0_24], %23 {strides = array<i32>} : memref<16x1024xf32, #tpu.memory_space<vmem>>, vector<16x1024xf32>,
    %c0_25 = arith.constant 0 : index
    %c0_26 = arith.constant 0 : index
    %31 = vector.load %arg13[%c0_25, %c0_26] : memref<16x128xf32, #tpu.memory_space<vmem>>, vector<16x128xf32>
    tpu.vector_store %arg13[%c0_25, %c0_26], %7 {strides = array<i32>} : memref<16x128xf32, #tpu.memory_space<vmem>>, vector<16x128xf32>,
    %c0_27 = arith.constant 0 : index
    %c0_28 = arith.constant 0 : index
    %32 = vector.load %arg14[%c0_27, %c0_28] : memref<16x128xf32, #tpu.memory_space<vmem>>, vector<16x128xf32>
    tpu.vector_store %arg14[%c0_27, %c0_28], %8 {strides = array<i32>} : memref<16x128xf32, #tpu.memory_space<vmem>>, vector<16x128xf32>,
    %c0_29 = arith.constant 0 : index
    %c0_30 = arith.constant 0 : index
    %33 = vector.load %arg15[%c0_29, %c0_30] : memref<16x128xf32, #tpu.memory_space<vmem>>, vector<16x128xf32>
    tpu.vector_store %arg15[%c0_29, %c0_30], %12 {strides = array<i32>} : memref<16x128xf32, #tpu.memory_space<vmem>>, vector<16x128xf32>,
    %34 = arith.subf %27, %0 : vector<16x1024xf32>
    %35 = arith.mulf %34, %34 : vector<16x1024xf32>
    %cst_31 = arith.constant dense<0.000000e+00> : vector<16xf32>
    %36 = vector.multi_reduction <add>, %35, %cst_31 [1] : vector<16x1024xf32> to vector<16xf32>
    %37 = vector.shape_cast %36 : vector<16xf32> to vector<16x1xf32>
    %cst_32 = arith.constant 0.000000e+00 : f32
    %38 = vector.broadcast %cst_32 : f32 to vector<16x1xf32>
    %39 = arith.subf %38, %37 : vector<16x1xf32>
    %cst_33 = arith.constant 5.000000e-01 : f32
    %40 = vector.broadcast %cst_33 : f32 to vector<16x128xf32>
    %41 = arith.mulf %40, %12 : vector<16x128xf32>
    %42 = arith.mulf %41, %12 : vector<16x128xf32>
    %cst_34 = arith.constant 5.000000e-01 : f32
    %43 = vector.broadcast %cst_34 : f32 to vector<16x128xf32>
    %44 = arith.mulf %43, %9 : vector<16x128xf32>
    %45 = arith.mulf %44, %9 : vector<16x128xf32>
    %46 = arith.subf %42, %45 : vector<16x128xf32>
    %47 = arith.subf %46, %8 : vector<16x128xf32>
    %cst_35 = arith.constant dense<0.000000e+00> : vector<16xf32>
    %48 = vector.multi_reduction <add>, %47, %cst_35 [1] : vector<16x128xf32> to vector<16xf32>
    %49 = vector.shape_cast %48 : vector<16xf32> to vector<16x1xf32>
    %50 = arith.subf %39, %49 : vector<16x1xf32>
    %51 = tpu.iota {dimensions = array<i32: 1>} : vector<16x128xi32>
    %c0_i32 = arith.constant 0 : i32
    %52 = vector.broadcast %c0_i32 : i32 to vector<16x128xi32>
    %53 = arith.cmpi eq, %51, %52 : vector<16x128xi32>
    %c1_i32 = arith.constant 1 : i32
    %54 = vector.broadcast %c1_i32 : i32 to vector<16x128xi32>
    %55 = arith.cmpi eq, %51, %54 : vector<16x128xi32>
    %c2_i32 = arith.constant 2 : i32
    %56 = vector.broadcast %c2_i32 : i32 to vector<16x128xi32>
    %57 = arith.cmpi eq, %51, %56 : vector<16x128xi32>
    %cst_36 = arith.constant 0.000000e+00 : f32
    %58 = vector.shape_cast %49 : vector<16x1xf32> to vector<16x1xf32>
    %59 = vector.broadcast %58 : vector<16x1xf32> to vector<16x128xf32>
    %60 = vector.broadcast %cst_36 : f32 to vector<16x128xf32>
    %61 = arith.select %57, %59, %60 : vector<16x128xi1>, vector<16x128xf32>
    %62 = vector.shape_cast %39 : vector<16x1xf32> to vector<16x1xf32>
    %63 = vector.broadcast %62 : vector<16x1xf32> to vector<16x128xf32>
    %64 = arith.select %55, %63, %61 : vector<16x128xi1>, vector<16x128xf32>
    %65 = vector.shape_cast %50 : vector<16x1xf32> to vector<16x1xf32>
    %66 = vector.broadcast %65 : vector<16x1xf32> to vector<16x128xf32>
    %67 = arith.select %53, %66, %64 : vector<16x128xi1>, vector<16x128xf32>
    %c0_37 = arith.constant 0 : index
    %c0_38 = arith.constant 0 : index
    %68 = vector.load %arg16[%c0_37, %c0_38] : memref<16x128xf32, #tpu.memory_space<vmem>>, vector<16x128xf32>
    tpu.vector_store %arg16[%c0_37, %c0_38], %67 {strides = array<i32>} : memref<16x128xf32, #tpu.memory_space<vmem>>, vector<16x128xf32>,
    return
  }
  func.func @transform_0(%arg0: i32) -> (i32, i32) {
    %c0_i32 = arith.constant 0 : i32
    %c0_i32_0 = arith.constant 0 : i32
    return %arg0, %c0_i32 : i32, i32
  }
  func.func @transform_1(%arg0: i32) -> (i32, i32) {
    %c0_i32 = arith.constant 0 : i32
    %c0_i32_0 = arith.constant 0 : i32
    return %arg0, %c0_i32 : i32, i32
  }
  func.func @transform_2(%arg0: i32) -> (i32, i32) {
    %c0_i32 = arith.constant 0 : i32
    %c0_i32_0 = arith.constant 0 : i32
    return %arg0, %c0_i32 : i32, i32
  }
  func.func @transform_3(%arg0: i32) -> (i32, i32) {
    %c0_i32 = arith.constant 0 : i32
    %c0_i32_0 = arith.constant 0 : i32
    %c0_i32_1 = arith.constant 0 : i32
    return %c0_i32, %c0_i32_0 : i32, i32
  }
  func.func @transform_4(%arg0: i32) -> (i32, i32) {
    %c0_i32 = arith.constant 0 : i32
    %c0_i32_0 = arith.constant 0 : i32
    %c0_i32_1 = arith.constant 0 : i32
    return %c0_i32, %c0_i32_0 : i32, i32
  }
  func.func @transform_5(%arg0: i32) -> (i32, i32) {
    %c0_i32 = arith.constant 0 : i32
    %c0_i32_0 = arith.constant 0 : i32
    %c0_i32_1 = arith.constant 0 : i32
    return %c0_i32, %c0_i32_0 : i32, i32
  }
  func.func @transform_6(%arg0: i32) -> (i32, i32) {
    %c0_i32 = arith.constant 0 : i32
    %c0_i32_0 = arith.constant 0 : i32
    %c0_i32_1 = arith.constant 0 : i32
    return %c0_i32, %c0_i32_0 : i32, i32
  }
  func.func @transform_7(%arg0: i32) -> (i32, i32) {
    %c0_i32 = arith.constant 0 : i32
    %c0_i32_0 = arith.constant 0 : i32
    %c0_i32_1 = arith.constant 0 : i32
    return %c0_i32, %c0_i32_0 : i32, i32
  }
  func.func @transform_8(%arg0: i32) -> (i32, i32) {
    %c0_i32 = arith.constant 0 : i32
    %c0_i32_0 = arith.constant 0 : i32
    %c0_i32_1 = arith.constant 0 : i32
    return %c0_i32, %c0_i32_0 : i32, i32
  }
  func.func @transform_9(%arg0: i32) -> (i32, i32) {
    %c0_i32 = arith.constant 0 : i32
    %c0_i32_0 = arith.constant 0 : i32
    return %arg0, %c0_i32 : i32, i32
  }
  func.func @transform_10(%arg0: i32) -> (i32, i32) {
    %c0_i32 = arith.constant 0 : i32
    %c0_i32_0 = arith.constant 0 : i32
    return %arg0, %c0_i32 : i32, i32
  }
  func.func @transform_11(%arg0: i32) -> (i32, i32) {
    %c0_i32 = arith.constant 0 : i32
    %c0_i32_0 = arith.constant 0 : i32
    return %arg0, %c0_i32 : i32, i32
  }
  func.func @transform_12(%arg0: i32) -> (i32, i32) {
    %c0_i32 = arith.constant 0 : i32
    %c0_i32_0 = arith.constant 0 : i32
    return %arg0, %c0_i32 : i32, i32
  }
  func.func @transform_13(%arg0: i32) -> (i32, i32) {
    %c0_i32 = arith.constant 0 : i32
    %c0_i32_0 = arith.constant 0 : i32
    return %arg0, %c0_i32 : i32, i32
  }
  func.func @transform_14(%arg0: i32) -> (i32, i32) {
    %c0_i32 = arith.constant 0 : i32
    %c0_i32_0 = arith.constant 0 : i32
    return %arg0, %c0_i32 : i32, i32
  }
  func.func @transform_15(%arg0: i32) -> (i32, i32) {
    %c0_i32 = arith.constant 0 : i32
    %c0_i32_0 = arith.constant 0 : i32
    return %arg0, %c0_i32 : i32, i32
  }
}

</mosaic_0001>

<llo_original>
// kernel: variational_inference.3
$region0: #{variational_inference.3}
  #allocation0 [shape = 'u32[]', space=smem, size = 0x4, offset = 0x4, fixed_abs, tag = 'smem constant byte address 0x4 - core index']
  #allocation1 [shape = 'u32[72,128]{1,0:T(1,128)}', space=vmem, size = 0x9000, scoped, tag = 'internal scratch']
  %s0 = inlined_call_operand.vmem [shape: f32[16,1024], index: 0, kind: input, shape index: {}]
  %s1 = inlined_call_operand.vmem [shape: f32[16,128], index: 1, kind: input, shape index: {}]
  %s2 = inlined_call_operand.vmem [shape: f32[16,1024], index: 2, kind: input, shape index: {}]
  %s3 = inlined_call_operand.hbm [shape: bf16[1024,256], index: 3, kind: input, shape index: {}]
  %s4 = inlined_call_operand.vmem [shape: f32[1,256], index: 4, kind: input, shape index: {}]
  %s5 = inlined_call_operand.hbm [shape: bf16[128,1024], index: 5, kind: input, shape index: {}]
  %s6 = inlined_call_operand.hbm [shape: bf16[128,1024], index: 6, kind: input, shape index: {}]
  %s7 = inlined_call_operand.vmem [shape: f32[1,1024], index: 7, kind: input, shape index: {}]
  %s8 = inlined_call_operand.vmem [shape: f32[1,1024], index: 8, kind: input, shape index: {}]
  %s9 = inlined_call_operand.vmem [shape: f32[16,1024], index: 9, kind: output, shape index: {0}]
  %s10 = inlined_call_operand.vmem [shape: f32[16,1024], index: 10, kind: output, shape index: {1}]
  %s11 = inlined_call_operand.vmem [shape: f32[16,1024], index: 11, kind: output, shape index: {2}]
  %s12 = inlined_call_operand.vmem [shape: f32[16,128], index: 12, kind: output, shape index: {3}]
  %s13 = inlined_call_operand.vmem [shape: f32[16,128], index: 13, kind: output, shape index: {4}]
  %s14 = inlined_call_operand.vmem [shape: f32[16,128], index: 14, kind: output, shape index: {5}]
  %s15 = inlined_call_operand.vmem [shape: f32[16,128], index: 15, kind: output, shape index: {6}]
  %16 = xla_tuple %s9, %s10, %s11, %s12, %s13, %s14, %s15
  %s17 = sld [smem:[#allocation0]]
  $region106: #{variational_inference.3} parent=0
    _
  %s19 = ssub.s32 1, %s17
  %s20 = scalar_select 0, %s19, %s17
  $region1: #{variational_inference.3} parent=0
    #allocation2 [shape = 'u8[524288]{0}', space=vmem, size = 0x80000, scoped, tag = 'input window, operand 3, single buffered']
    #allocation3 [shape = 's32[1]{0}', space=sflag, size = 0x4, scoped, tag = 'scoped memory for variational_inference.3']
    #allocation4 [shape = 'u8[262144]{0}', space=vmem, size = 0x40000, scoped, tag = 'input window, operand 5, single buffered']
    #allocation5 [shape = 's32[1]{0}', space=sflag, size = 0x4, scoped, tag = 'scoped memory for variational_inference.3']
    #allocation6 [shape = 'u8[262144]{0}', space=vmem, size = 0x40000, scoped, tag = 'input window, operand 6, single buffered']
    %21 = vsyncpa [#allocation3], 0
    %22 = vsyncpa [#allocation5], 0
    // Predicated region
    $region2: #{variational_inference.3} parent=1 // pred_check
      _
    $region3: #{variational_inference.3} parent=1 // pred_check_branch
      %24 = sbr.rel (0) target = $region5
    $region4: #{variational_inference.3} parent=1 // pred_region
      _
    $region5: #{variational_inference.3} parent=1 // pred_fallthru
      _
    // Predicated region
    $region6: #{variational_inference.3} parent=1 // pred_check
      _
    $region7: #{variational_inference.3} parent=1 // pred_check_branch
      %26 = sbr.rel (0) target = $region9
    $region8: #{variational_inference.3} parent=1 // pred_region
      _
    $region9: #{variational_inference.3} parent=1 // pred_fallthru
      _
    // Predicated region
    $region10: #{variational_inference.3} parent=1 // pred_check
      _
    $region11: #{variational_inference.3} parent=1 // pred_check_branch
      %28 = sbr.rel (0) target = $region13
    $region12: #{variational_inference.3} parent=1 // pred_region
      _
    $region13: #{variational_inference.3} parent=1 // pred_fallthru
      _
    // Predicated region
    $region14: #{variational_inference.3} parent=1 // pred_check
      _
    $region15: #{variational_inference.3} parent=1 // pred_check_branch
      %30 = sbr.rel (0) target = $region17
    $region16: #{variational_inference.3} parent=1 // pred_region
      %32 = vsyncadd [#allocation3], 0
      %s33 = sshll.u32 %s3, 4
      %s34 = int_to_ptr.hbm [resolvable:$true] %s33
      %s35 = sshll.u32 [#allocation2], 4
      %s36 = int_to_ptr.vmem [resolvable:$true] %s35
      %41 = dma.hbm_to_vmem [thread:$0]  %s34, 16384, %s36, [#allocation3], 128, 128, 8
    $region17: #{variational_inference.3} parent=1 // pred_fallthru
      _
    // Predicated region
    $region18: #{variational_inference.3} parent=1 // pred_check
      _
    $region19: #{variational_inference.3} parent=1 // pred_check_branch
      %43 = sbr.rel (0) target = $region21
    $region20: #{variational_inference.3} parent=1 // pred_region
      _
    $region21: #{variational_inference.3} parent=1 // pred_fallthru
      _
    // Predicated region
    $region22: #{variational_inference.3} parent=1 // pred_check
      _
    $region23: #{variational_inference.3} parent=1 // pred_check_branch
      %45 = sbr.rel (0) target = $region25
    $region24: #{variational_inference.3} parent=1 // pred_region
      %47 = vsyncadd [#allocation5], 0
      %s48 = sshll.u32 %s5, 4
      %s49 = int_to_ptr.hbm [resolvable:$true] %s48
      %s50 = sshll.u32 [#allocation4], 4
      %s51 = int_to_ptr.vmem [resolvable:$true] %s50
      %56 = dma.hbm_to_vmem [thread:$0]  %s49, 8192, %s51, [#allocation5], 512, 512, 32
    $region25: #{variational_inference.3} parent=1 // pred_fallthru
      _
    // Predicated region
    $region26: #{variational_inference.3} parent=1 // pred_check
      _
    $region27: #{variational_inference.3} parent=1 // pred_check_branch
      %58 = sbr.rel (0) target = $region29
    $region28: #{variational_inference.3} parent=1 // pred_region
      %60 = vsyncadd [#allocation5], 0
      %s61 = sshll.u32 %s6, 4
      %s62 = int_to_ptr.hbm [resolvable:$true] %s61
      %s63 = sshll.u32 [#allocation6], 4
      %s64 = int_to_ptr.vmem [resolvable:$true] %s63
      %69 = dma.hbm_to_vmem [thread:$0]  %s62, 8192, %s64, [#allocation5], 512, 512, 32
    $region29: #{variational_inference.3} parent=1 // pred_fallthru
      _
    // Predicated region
    $region30: #{variational_inference.3} parent=1 // pred_check
      _
    $region31: #{variational_inference.3} parent=1 // pred_check_branch
      %71 = sbr.rel (0) target = $region33
    $region32: #{variational_inference.3} parent=1 // pred_region
      _
    $region33: #{variational_inference.3} parent=1 // pred_fallthru
      _
    // Predicated region
    $region34: #{variational_inference.3} parent=1 // pred_check
      _
    $region35: #{variational_inference.3} parent=1 // pred_check_branch
      %73 = sbr.rel (0) target = $region37
    $region36: #{variational_inference.3} parent=1 // pred_region
      _
    $region37: #{variational_inference.3} parent=1 // pred_fallthru
      _
    // Predicated region
    $region38: #{variational_inference.3} parent=1 // pred_check
      _
    $region39: #{variational_inference.3} parent=1 // pred_check_branch
      %75 = sbr.rel (0) target = $region41
    $region40: #{variational_inference.3} parent=1 // pred_region
      %77 = dma.done [#allocation3], 16384
    $region41: #{variational_inference.3} parent=1 // pred_fallthru
      _
    // Predicated region
    $region42: #{variational_inference.3} parent=1 // pred_check
      _
    $region43: #{variational_inference.3} parent=1 // pred_check_branch
      %79 = sbr.rel (0) target = $region45
    $region44: #{variational_inference.3} parent=1 // pred_region
      %81 = dma.done [#allocation5], 8192
    $region45: #{variational_inference.3} parent=1 // pred_fallthru
      _
    // Predicated region
    $region46: #{variational_inference.3} parent=1 // pred_check
      _
    $region47: #{variational_inference.3} parent=1 // pred_check_branch
      %83 = sbr.rel (0) target = $region49
    $region48: #{variational_inference.3} parent=1 // pred_region
      %85 = dma.done [#allocation5], 8192
    $region49: #{variational_inference.3} parent=1 // pred_fallthru
      _
    %v86 = vld [vmem:[%s0] sm:$0xff]
    %v87 = vld [vmem:[%s0 + $0x8] sm:$0xff]
    %v88 = vld [vmem:[%s0 + $0x10] sm:$0xff]
    %v89 = vld [vmem:[%s0 + $0x18] sm:$0xff]
    %v90 = vld [vmem:[%s0 + $0x20] sm:$0xff]
    %v91 = vld [vmem:[%s0 + $0x28] sm:$0xff]
    %v92 = vld [vmem:[%s0 + $0x30] sm:$0xff]
    %v93 = vld [vmem:[%s0 + $0x38] sm:$0xff]
    %v94 = vld [vmem:[%s0 + $0x40] sm:$0xff]
    %v95 = vld [vmem:[%s0 + $0x48] sm:$0xff]
    %v96 = vld [vmem:[%s0 + $0x50] sm:$0xff]
    %v97 = vld [vmem:[%s0 + $0x58] sm:$0xff]
    %v98 = vld [vmem:[%s0 + $0x60] sm:$0xff]
    %v99 = vld [vmem:[%s0 + $0x68] sm:$0xff]
    %v100 = vld [vmem:[%s0 + $0x70] sm:$0xff]
    %v101 = vld [vmem:[%s0 + $0x78] sm:$0xff]
    %v102 = vpack.c.bf16 %v94, %v86
    %v103 = vpack.c.bf16 %v95, %v87
    %v104 = vpack.c.bf16 %v96, %v88
    %v105 = vpack.c.bf16 %v97, %v89
    %v106 = vpack.c.bf16 %v98, %v90
    %v107 = vpack.c.bf16 %v99, %v91
    %v108 = vpack.c.bf16 %v100, %v92
    %v109 = vpack.c.bf16 %v101, %v93
    %v110 = vld [vmem:[#allocation2] sm:$0xff]
    %v111 = vld [vmem:[#allocation2 + $0x8] sm:$0xff]
    %v112 = vld [vmem:[#allocation2 + $0x10] sm:$0xff]
    %v113 = vld [vmem:[#allocation2 + $0x18] sm:$0xff]
    %v114 = vld [vmem:[#allocation2 + $0x20] sm:$0xff]
    %v115 = vld [vmem:[#allocation2 + $0x28] sm:$0xff]
    %v116 = vld [vmem:[#allocation2 + $0x30] sm:$0xff]
    %v117 = vld [vmem:[#allocation2 + $0x38] sm:$0xff]
    %v118 = vld [vmem:[#allocation2 + $0x40] sm:$0xff]
    %v119 = vld [vmem:[#allocation2 + $0x48] sm:$0xff]
    %v120 = vld [vmem:[#allocation2 + $0x50] sm:$0xff]
    %v121 = vld [vmem:[#allocation2 + $0x58] sm:$0xff]
    %v122 = vld [vmem:[#allocation2 + $0x60] sm:$0xff]
    %v123 = vld [vmem:[#allocation2 + $0x68] sm:$0xff]
    %v124 = vld [vmem:[#allocation2 + $0x70] sm:$0xff]
    %v125 = vld [vmem:[#allocation2 + $0x78] sm:$0xff]
    %v126 = vld [vmem:[#allocation2 + $0x80] sm:$0xff]
    %v127 = vld [vmem:[#allocation2 + $0x88] sm:$0xff]
    %v128 = vld [vmem:[#allocation2 + $0x90] sm:$0xff]
    %v129 = vld [vmem:[#allocation2 + $0x98] sm:$0xff]
    %v130 = vld [vmem:[#allocation2 + $0xa0] sm:$0xff]
    %v131 = vld [vmem:[#allocation2 + $0xa8] sm:$0xff]
    %v132 = vld [vmem:[#allocation2 + $0xb0] sm:$0xff]
    %v133 = vld [vmem:[#allocation2 + $0xb8] sm:$0xff]
    %v134 = vld [vmem:[#allocation2 + $0xc0] sm:$0xff]
    %v135 = vld [vmem:[#allocation2 + $0xc8] sm:$0xff]
    %v136 = vld [vmem:[#allocation2 + $0xd0] sm:$0xff]
    %v137 = vld [vmem:[#allocation2 + $0xd8] sm:$0xff]
    %v138 = vld [vmem:[#allocation2 + $0xe0] sm:$0xff]
    %v139 = vld [vmem:[#allocation2 + $0xe8] sm:$0xff]
    %v140 = vld [vmem:[#allocation2 + $0xf0] sm:$0xff]
    %v141 = vld [vmem:[#allocation2 + $0xf8] sm:$0xff]
    %v142 = vld [vmem:[#allocation2 + $0x100] sm:$0xff]
    %v143 = vld [vmem:[#allocation2 + $0x108] sm:$0xff]
    %v144 = vld [vmem:[#allocation2 + $0x110] sm:$0xff]
    %v145 = vld [vmem:[#allocation2 + $0x118] sm:$0xff]
    %v146 = vld [vmem:[#allocation2 + $0x120] sm:$0xff]
    %v147 = vld [vmem:[#allocation2 + $0x128] sm:$0xff]
    %v148 = vld [vmem:[#allocation2 + $0x130] sm:$0xff]
    %v149 = vld [vmem:[#allocation2 + $0x138] sm:$0xff]
    %v150 = vld [vmem:[#allocation2 + $0x140] sm:$0xff]
    %v151 = vld [vmem:[#allocation2 + $0x148] sm:$0xff]
    %v152 = vld [vmem:[#allocation2 + $0x150] sm:$0xff]
    %v153 = vld [vmem:[#allocation2 + $0x158] sm:$0xff]
    %v154 = vld [vmem:[#allocation2 + $0x160] sm:$0xff]
    %v155 = vld [vmem:[#allocation2 + $0x168] sm:$0xff]
    %v156 = vld [vmem:[#allocation2 + $0x170] sm:$0xff]
    %v157 = vld [vmem:[#allocation2 + $0x178] sm:$0xff]
    %v158 = vld [vmem:[#allocation2 + $0x180] sm:$0xff]
    %v159 = vld [vmem:[#allocation2 + $0x188] sm:$0xff]
    %v160 = vld [vmem:[#allocation2 + $0x190] sm:$0xff]
    %v161 = vld [vmem:[#allocation2 + $0x198] sm:$0xff]
    %v162 = vld [vmem:[#allocation2 + $0x1a0] sm:$0xff]
    %v163 = vld [vmem:[#allocation2 + $0x1a8] sm:$0xff]
    %v164 = vld [vmem:[#allocation2 + $0x1b0] sm:$0xff]
    %v165 = vld [vmem:[#allocation2 + $0x1b8] sm:$0xff]
    %v166 = vld [vmem:[#allocation2 + $0x1c0] sm:$0xff]
    %v167 = vld [vmem:[#allocation2 + $0x1c8] sm:$0xff]
    %v168 = vld [vmem:[#allocation2 + $0x1d0] sm:$0xff]
    %v169 = vld [vmem:[#allocation2 + $0x1d8] sm:$0xff]
    %v170 = vld [vmem:[#allocation2 + $0x1e0] sm:$0xff]
    %v171 = vld [vmem:[#allocation2 + $0x1e8] sm:$0xff]
    %v172 = vld [vmem:[#allocation2 + $0x1f0] sm:$0xff]
    %v173 = vld [vmem:[#allocation2 + $0x1f8] sm:$0xff]
    %v174 = vld [vmem:[#allocation2 + $0x200] sm:$0xff]
    %v175 = vld [vmem:[#allocation2 + $0x208] sm:$0xff]
    %v176 = vld [vmem:[#allocation2 + $0x210] sm:$0xff]
    %v177 = vld [vmem:[#allocation2 + $0x218] sm:$0xff]
    %v178 = vld [vmem:[#allocation2 + $0x220] sm:$0xff]
    %v179 = vld [vmem:[#allocation2 + $0x228] sm:$0xff]
    %v180 = vld [vmem:[#allocation2 + $0x230] sm:$0xff]
    %v181 = vld [vmem:[#allocation2 + $0x238] sm:$0xff]
    %v182 = vld [vmem:[#allocation2 + $0x240] sm:$0xff]
    %v183 = vld [vmem:[#allocation2 + $0x248] sm:$0xff]
    %v184 = vld [vmem:[#allocation2 + $0x250] sm:$0xff]
    %v185 = vld [vmem:[#allocation2 + $0x258] sm:$0xff]
    %v186 = vld [vmem:[#allocation2 + $0x260] sm:$0xff]
    %v187 = vld [vmem:[#allocation2 + $0x268] sm:$0xff]
    %v188 = vld [vmem:[#allocation2 + $0x270] sm:$0xff]
    %v189 = vld [vmem:[#allocation2 + $0x278] sm:$0xff]
    %v190 = vld [vmem:[#allocation2 + $0x280] sm:$0xff]
    %v191 = vld [vmem:[#allocation2 + $0x288] sm:$0xff]
    %v192 = vld [vmem:[#allocation2 + $0x290] sm:$0xff]
    %v193 = vld [vmem:[#allocation2 + $0x298] sm:$0xff]
    %v194 = vld [vmem:[#allocation2 + $0x2a0] sm:$0xff]
    %v195 = vld [vmem:[#allocation2 + $0x2a8] sm:$0xff]
    %v196 = vld [vmem:[#allocation2 + $0x2b0] sm:$0xff]
    %v197 = vld [vmem:[#allocation2 + $0x2b8] sm:$0xff]
    %v198 = vld [vmem:[#allocation2 + $0x2c0] sm:$0xff]
    %v199 = vld [vmem:[#allocation2 + $0x2c8] sm:$0xff]
    %v200 = vld [vmem:[#allocation2 + $0x2d0] sm:$0xff]
    %v201 = vld [vmem:[#allocation2 + $0x2d8] sm:$0xff]
    %v202 = vld [vmem:[#allocation2 + $0x2e0] sm:$0xff]
    %v203 = vld [vmem:[#allocation2 + $0x2e8] sm:$0xff]
    %v204 = vld [vmem:[#allocation2 + $0x2f0] sm:$0xff]
    %v205 = vld [vmem:[#allocation2 + $0x2f8] sm:$0xff]
    %v206 = vld [vmem:[#allocation2 + $0x300] sm:$0xff]
    %v207 = vld [vmem:[#allocation2 + $0x308] sm:$0xff]
    %v208 = vld [vmem:[#allocation2 + $0x310] sm:$0xff]
    %v209 = vld [vmem:[#allocation2 + $0x318] sm:$0xff]
    %v210 = vld [vmem:[#allocation2 + $0x320] sm:$0xff]
    %v211 = vld [vmem:[#allocation2 + $0x328] sm:$0xff]
    %v212 = vld [vmem:[#allocation2 + $0x330] sm:$0xff]
    %v213 = vld [vmem:[#allocation2 + $0x338] sm:$0xff]
    %v214 = vld [vmem:[#allocation2 + $0x340] sm:$0xff]
    %v215 = vld [vmem:[#allocation2 + $0x348] sm:$0xff]
    %v216 = vld [vmem:[#allocation2 + $0x350] sm:$0xff]
    %v217 = vld [vmem:[#allocation2 + $0x358] sm:$0xff]
    %v218 = vld [vmem:[#allocation2 + $0x360] sm:$0xff]
    %v219 = vld [vmem:[#allocation2 + $0x368] sm:$0xff]
    %v220 = vld [vmem:[#allocation2 + $0x370] sm:$0xff]
    %v221 = vld [vmem:[#allocation2 + $0x378] sm:$0xff]
    %v222 = vld [vmem:[#allocation2 + $0x380] sm:$0xff]
    %v223 = vld [vmem:[#allocation2 + $0x388] sm:$0xff]
    %v224 = vld [vmem:[#allocation2 + $0x390] sm:$0xff]
    %v225 = vld [vmem:[#allocation2 + $0x398] sm:$0xff]
    %v226 = vld [vmem:[#allocation2 + $0x3a0] sm:$0xff]
    %v227 = vld [vmem:[#allocation2 + $0x3a8] sm:$0xff]
    %v228 = vld [vmem:[#allocation2 + $0x3b0] sm:$0xff]
    %v229 = vld [vmem:[#allocation2 + $0x3b8] sm:$0xff]
    %v230 = vld [vmem:[#allocation2 + $0x3c0] sm:$0xff]
    %v231 = vld [vmem:[#allocation2 + $0x3c8] sm:$0xff]
    %v232 = vld [vmem:[#allocation2 + $0x3d0] sm:$0xff]
    %v233 = vld [vmem:[#allocation2 + $0x3d8] sm:$0xff]
    %v234 = vld [vmem:[#allocation2 + $0x3e0] sm:$0xff]
    %v235 = vld [vmem:[#allocation2 + $0x3e8] sm:$0xff]
    %v236 = vld [vmem:[#allocation2 + $0x3f0] sm:$0xff]
    %v237 = vld [vmem:[#allocation2 + $0x3f8] sm:$0xff]
    %v238 = vld [vmem:[%s4] sm:$0x3]
    %v240 = vperm.slane %v238, 0
    %v241 = vperm.slane %v238, 1
    %v372 = vunpack.c.l.b16 %v110
    %v373 = vunpack.c.h.b16 %v110
    %v374 = vunpack.c.l.b16 %v111
    %v375 = vunpack.c.h.b16 %v111
    %v376 = vunpack.c.l.b16 %v112
    %v377 = vunpack.c.h.b16 %v112
    %v378 = vunpack.c.l.b16 %v113
    %v379 = vunpack.c.h.b16 %v113
    %v380 = vunpack.c.l.b16 %v114
    %v381 = vunpack.c.h.b16 %v114
    %v382 = vunpack.c.l.b16 %v115
    %v383 = vunpack.c.h.b16 %v115
    %v384 = vunpack.c.l.b16 %v116
    %v385 = vunpack.c.h.b16 %v116
    %v386 = vunpack.c.l.b16 %v117
    %v387 = vunpack.c.h.b16 %v117
    %v388 = vunpack.c.l.b16 %v118
    %v389 = vunpack.c.h.b16 %v118
    %v390 = vunpack.c.l.b16 %v119
    %v391 = vunpack.c.h.b16 %v119
    %v392 = vunpack.c.l.b16 %v120
    %v393 = vunpack.c.h.b16 %v120
    %v394 = vunpack.c.l.b16 %v121
    %v395 = vunpack.c.h.b16 %v121
    %v396 = vunpack.c.l.b16 %v122
    %v397 = vunpack.c.h.b16 %v122
    %v398 = vunpack.c.l.b16 %v123
    %v399 = vunpack.c.h.b16 %v123
    %v400 = vunpack.c.l.b16 %v124
    %v401 = vunpack.c.h.b16 %v124
    %v402 = vunpack.c.l.b16 %v125
    %v403 = vunpack.c.h.b16 %v125
    %v404 = vunpack.c.l.b16 %v126
    %v405 = vunpack.c.h.b16 %v126
    %v406 = vunpack.c.l.b16 %v127
    %v407 = vunpack.c.h.b16 %v127
    %v408 = vunpack.c.l.b16 %v128
    %v409 = vunpack.c.h.b16 %v128
    %v410 = vunpack.c.l.b16 %v129
    %v411 = vunpack.c.h.b16 %v129
    %v412 = vunpack.c.l.b16 %v130
    %v413 = vunpack.c.h.b16 %v130
    %v414 = vunpack.c.l.b16 %v131
    %v415 = vunpack.c.h.b16 %v131
    %v416 = vunpack.c.l.b16 %v132
    %v417 = vunpack.c.h.b16 %v132
    %v418 = vunpack.c.l.b16 %v133
    %v419 = vunpack.c.h.b16 %v133
    %v420 = vunpack.c.l.b16 %v134
    %v421 = vunpack.c.h.b16 %v134
    %v422 = vunpack.c.l.b16 %v135
    %v423 = vunpack.c.h.b16 %v135
    %v424 = vunpack.c.l.b16 %v136
    %v425 = vunpack.c.h.b16 %v136
    %v426 = vunpack.c.l.b16 %v137
    %v427 = vunpack.c.h.b16 %v137
    %v428 = vunpack.c.l.b16 %v138
    %v429 = vunpack.c.h.b16 %v138
    %v430 = vunpack.c.l.b16 %v139
    %v431 = vunpack.c.h.b16 %v139
    %v432 = vunpack.c.l.b16 %v140
    %v433 = vunpack.c.h.b16 %v140
    %v434 = vunpack.c.l.b16 %v141
    %v435 = vunpack.c.h.b16 %v141
    %v436 = vunpack.c.l.b16 %v142
    %v437 = vunpack.c.h.b16 %v142
    %v438 = vunpack.c.l.b16 %v143
    %v439 = vunpack.c.h.b16 %v143
    %v440 = vunpack.c.l.b16 %v144
    %v441 = vunpack.c.h.b16 %v144
    %v442 = vunpack.c.l.b16 %v145
    %v443 = vunpack.c.h.b16 %v145
    %v444 = vunpack.c.l.b16 %v146
    %v445 = vunpack.c.h.b16 %v146
    %v446 = vunpack.c.l.b16 %v147
    %v447 = vunpack.c.h.b16 %v147
    %v448 = vunpack.c.l.b16 %v148
    %v449 = vunpack.c.h.b16 %v148
    %v450 = vunpack.c.l.b16 %v149
    %v451 = vunpack.c.h.b16 %v149
    %v452 = vunpack.c.l.b16 %v150
    %v453 = vunpack.c.h.b16 %v150
    %v454 = vunpack.c.l.b16 %v151
    %v455 = vunpack.c.h.b16 %v151
    %v456 = vunpack.c.l.b16 %v152
    %v457 = vunpack.c.h.b16 %v152
    %v458 = vunpack.c.l.b16 %v153
    %v459 = vunpack.c.h.b16 %v153
    %v460 = vunpack.c.l.b16 %v154
    %v461 = vunpack.c.h.b16 %v154
    %v462 = vunpack.c.l.b16 %v155
    %v463 = vunpack.c.h.b16 %v155
    %v464 = vunpack.c.l.b16 %v156
    %v465 = vunpack.c.h.b16 %v156
    %v466 = vunpack.c.l.b16 %v157
    %v467 = vunpack.c.h.b16 %v157
    %v468 = vunpack.c.l.b16 %v158
    %v469 = vunpack.c.h.b16 %v158
    %v470 = vunpack.c.l.b16 %v159
    %v471 = vunpack.c.h.b16 %v159
    %v472 = vunpack.c.l.b16 %v160
    %v473 = vunpack.c.h.b16 %v160
    %v474 = vunpack.c.l.b16 %v161
    %v475 = vunpack.c.h.b16 %v161
    %v476 = vunpack.c.l.b16 %v162
    %v477 = vunpack.c.h.b16 %v162
    %v478 = vunpack.c.l.b16 %v163
    %v479 = vunpack.c.h.b16 %v163
    %v480 = vunpack.c.l.b16 %v164
    %v481 = vunpack.c.h.b16 %v164
    %v482 = vunpack.c.l.b16 %v165
    %v483 = vunpack.c.h.b16 %v165
    %v484 = vunpack.c.l.b16 %v166
    %v485 = vunpack.c.h.b16 %v166
    %v486 = vunpack.c.l.b16 %v167
    %v487 = vunpack.c.h.b16 %v167
    %v488 = vunpack.c.l.b16 %v168
    %v489 = vunpack.c.h.b16 %v168
    %v490 = vunpack.c.l.b16 %v169
    %v491 = vunpack.c.h.b16 %v169
    %v492 = vunpack.c.l.b16 %v170
    %v493 = vunpack.c.h.b16 %v170
    %v494 = vunpack.c.l.b16 %v171
    %v495 = vunpack.c.h.b16 %v171
    %v496 = vunpack.c.l.b16 %v172
    %v497 = vunpack.c.h.b16 %v172
    %v498 = vunpack.c.l.b16 %v173
    %v499 = vunpack.c.h.b16 %v173
    %v500 = vunpack.c.l.b16 %v174
    %v501 = vunpack.c.h.b16 %v174
    %v502 = vunpack.c.l.b16 %v175
    %v503 = vunpack.c.h.b16 %v175
    %v504 = vunpack.c.l.b16 %v176
    %v505 = vunpack.c.h.b16 %v176
    %v506 = vunpack.c.l.b16 %v177
    %v507 = vunpack.c.h.b16 %v177
    %v508 = vunpack.c.l.b16 %v178
    %v509 = vunpack.c.h.b16 %v178
    %v510 = vunpack.c.l.b16 %v179
    %v511 = vunpack.c.h.b16 %v179
    %v512 = vunpack.c.l.b16 %v180
    %v513 = vunpack.c.h.b16 %v180
    %v514 = vunpack.c.l.b16 %v181
    %v515 = vunpack.c.h.b16 %v181
    %v516 = vunpack.c.l.b16 %v182
    %v517 = vunpack.c.h.b16 %v182
    %v518 = vunpack.c.l.b16 %v183
    %v519 = vunpack.c.h.b16 %v183
    %v520 = vunpack.c.l.b16 %v184
    %v521 = vunpack.c.h.b16 %v184
    %v522 = vunpack.c.l.b16 %v185
    %v523 = vunpack.c.h.b16 %v185
    %v524 = vunpack.c.l.b16 %v186
    %v525 = vunpack.c.h.b16 %v186
    %v526 = vunpack.c.l.b16 %v187
    %v527 = vunpack.c.h.b16 %v187
    %v528 = vunpack.c.l.b16 %v188
    %v529 = vunpack.c.h.b16 %v188
    %v530 = vunpack.c.l.b16 %v189
    %v531 = vunpack.c.h.b16 %v189
    %v532 = vunpack.c.l.b16 %v190
    %v533 = vunpack.c.h.b16 %v190
    %v534 = vunpack.c.l.b16 %v191
    %v535 = vunpack.c.h.b16 %v191
    %v536 = vunpack.c.l.b16 %v192
    %v537 = vunpack.c.h.b16 %v192
    %v538 = vunpack.c.l.b16 %v193
    %v539 = vunpack.c.h.b16 %v193
    %v540 = vunpack.c.l.b16 %v194
    %v541 = vunpack.c.h.b16 %v194
    %v542 = vunpack.c.l.b16 %v195
    %v543 = vunpack.c.h.b16 %v195
    %v544 = vunpack.c.l.b16 %v196
    %v545 = vunpack.c.h.b16 %v196
    %v546 = vunpack.c.l.b16 %v197
    %v547 = vunpack.c.h.b16 %v197
    %v548 = vunpack.c.l.b16 %v198
    %v549 = vunpack.c.h.b16 %v198
    %v550 = vunpack.c.l.b16 %v199
    %v551 = vunpack.c.h.b16 %v199
    %v552 = vunpack.c.l.b16 %v200
    %v553 = vunpack.c.h.b16 %v200
    %v554 = vunpack.c.l.b16 %v201
    %v555 = vunpack.c.h.b16 %v201
    %v556 = vunpack.c.l.b16 %v202
    %v557 = vunpack.c.h.b16 %v202
    %v558 = vunpack.c.l.b16 %v203
    %v559 = vunpack.c.h.b16 %v203
    %v560 = vunpack.c.l.b16 %v204
    %v561 = vunpack.c.h.b16 %v204
    %v562 = vunpack.c.l.b16 %v205
    %v563 = vunpack.c.h.b16 %v205
    %v564 = vunpack.c.l.b16 %v206
    %v565 = vunpack.c.h.b16 %v206
    %v566 = vunpack.c.l.b16 %v207
    %v567 = vunpack.c.h.b16 %v207
    %v568 = vunpack.c.l.b16 %v208
    %v569 = vunpack.c.h.b16 %v208
    %v570 = vunpack.c.l.b16 %v209
    %v571 = vunpack.c.h.b16 %v209
    %v572 = vunpack.c.l.b16 %v210
    %v573 = vunpack.c.h.b16 %v210
    %v574 = vunpack.c.l.b16 %v211
    %v575 = vunpack.c.h.b16 %v211
    %v576 = vunpack.c.l.b16 %v212
    %v577 = vunpack.c.h.b16 %v212
    %v578 = vunpack.c.l.b16 %v213
    %v579 = vunpack.c.h.b16 %v213
    %v580 = vunpack.c.l.b16 %v214
    %v581 = vunpack.c.h.b16 %v214
    %v582 = vunpack.c.l.b16 %v215
    %v583 = vunpack.c.h.b16 %v215
    %v584 = vunpack.c.l.b16 %v216
    %v585 = vunpack.c.h.b16 %v216
    %v586 = vunpack.c.l.b16 %v217
    %v587 = vunpack.c.h.b16 %v217
    %v588 = vunpack.c.l.b16 %v218
    %v589 = vunpack.c.h.b16 %v218
    %v590 = vunpack.c.l.b16 %v219
    %v591 = vunpack.c.h.b16 %v219
    %v592 = vunpack.c.l.b16 %v220
    %v593 = vunpack.c.h.b16 %v220
    %v594 = vunpack.c.l.b16 %v221
    %v595 = vunpack.c.h.b16 %v221
    %v596 = vunpack.c.l.b16 %v222
    %v597 = vunpack.c.h.b16 %v222
    %v598 = vunpack.c.l.b16 %v223
    %v599 = vunpack.c.h.b16 %v223
    %v600 = vunpack.c.l.b16 %v224
    %v601 = vunpack.c.h.b16 %v224
    %v602 = vunpack.c.l.b16 %v225
    %v603 = vunpack.c.h.b16 %v225
    %v604 = vunpack.c.l.b16 %v226
    %v605 = vunpack.c.h.b16 %v226
    %v606 = vunpack.c.l.b16 %v227
    %v607 = vunpack.c.h.b16 %v227
    %v608 = vunpack.c.l.b16 %v228
    %v609 = vunpack.c.h.b16 %v228
    %v610 = vunpack.c.l.b16 %v229
    %v611 = vunpack.c.h.b16 %v229
    %v612 = vunpack.c.l.b16 %v230
    %v613 = vunpack.c.h.b16 %v230
    %v614 = vunpack.c.l.b16 %v231
    %v615 = vunpack.c.h.b16 %v231
    %v616 = vunpack.c.l.b16 %v232
    %v617 = vunpack.c.h.b16 %v232
    %v618 = vunpack.c.l.b16 %v233
    %v619 = vunpack.c.h.b16 %v233
    %v620 = vunpack.c.l.b16 %v234
    %v621 = vunpack.c.h.b16 %v234
    %v622 = vunpack.c.l.b16 %v235
    %v623 = vunpack.c.h.b16 %v235
    %v624 = vunpack.c.l.b16 %v236
    %v625 = vunpack.c.h.b16 %v236
    %v626 = vunpack.c.l.b16 %v237
    %v627 = vunpack.c.h.b16 %v237
    %v628 = vpack.c.b16 %v374, %v372
    %v629 = vpack.c.b16 %v375, %v373
    %v630 = vpack.c.b16 %v378, %v376
    %v631 = vpack.c.b16 %v379, %v377
    %v632 = vpack.c.b16 %v382, %v380
    %v633 = vpack.c.b16 %v383, %v381
    %v634 = vpack.c.b16 %v386, %v384
    %v635 = vpack.c.b16 %v387, %v385
    %v636 = vpack.c.b16 %v390, %v388
    %v637 = vpack.c.b16 %v391, %v389
    %v638 = vpack.c.b16 %v394, %v392
    %v639 = vpack.c.b16 %v395, %v393
    %v640 = vpack.c.b16 %v398, %v396
    %v641 = vpack.c.b16 %v399, %v397
    %v642 = vpack.c.b16 %v402, %v400
    %v643 = vpack.c.b16 %v403, %v401
    %v644 = vpack.c.b16 %v406, %v404
    %v645 = vpack.c.b16 %v407, %v405
    %v646 = vpack.c.b16 %v410, %v408
    %v647 = vpack.c.b16 %v411, %v409
    %v648 = vpack.c.b16 %v414, %v412
    %v649 = vpack.c.b16 %v415, %v413
    %v650 = vpack.c.b16 %v418, %v416
    %v651 = vpack.c.b16 %v419, %v417
    %v652 = vpack.c.b16 %v422, %v420
    %v653 = vpack.c.b16 %v423, %v421
    %v654 = vpack.c.b16 %v426, %v424
    %v655 = vpack.c.b16 %v427, %v425
    %v656 = vpack.c.b16 %v430, %v428
    %v657 = vpack.c.b16 %v431, %v429
    %v658 = vpack.c.b16 %v434, %v432
    %v659 = vpack.c.b16 %v435, %v433
    %v660 = vpack.c.b16 %v438, %v436
    %v661 = vpack.c.b16 %v439, %v437
    %v662 = vpack.c.b16 %v442, %v440
    %v663 = vpack.c.b16 %v443, %v441
    %v664 = vpack.c.b16 %v446, %v444
    %v665 = vpack.c.b16 %v447, %v445
    %v666 = vpack.c.b16 %v450, %v448
    %v667 = vpack.c.b16 %v451, %v449
    %v668 = vpack.c.b16 %v454, %v452
    %v669 = vpack.c.b16 %v455, %v453
    %v670 = vpack.c.b16 %v458, %v456
    %v671 = vpack.c.b16 %v459, %v457
    %v672 = vpack.c.b16 %v462, %v460
    %v673 = vpack.c.b16 %v463, %v461
    %v674 = vpack.c.b16 %v466, %v464
    %v675 = vpack.c.b16 %v467, %v465
    %v676 = vpack.c.b16 %v470, %v468
    %v677 = vpack.c.b16 %v471, %v469
    %v678 = vpack.c.b16 %v474, %v472
    %v679 = vpack.c.b16 %v475, %v473
    %v680 = vpack.c.b16 %v478, %v476
    %v681 = vpack.c.b16 %v479, %v477
    %v682 = vpack.c.b16 %v482, %v480
    %v683 = vpack.c.b16 %v483, %v481
    %v684 = vpack.c.b16 %v486, %v484
    %v685 = vpack.c.b16 %v487, %v485
    %v686 = vpack.c.b16 %v490, %v488
    %v687 = vpack.c.b16 %v491, %v489
    %v688 = vpack.c.b16 %v494, %v492
    %v689 = vpack.c.b16 %v495, %v493
    %v690 = vpack.c.b16 %v498, %v496
    %v691 = vpack.c.b16 %v499, %v497
    %v692 = vpack.c.b16 %v502, %v500
    %v693 = vpack.c.b16 %v503, %v501
    %v694 = vpack.c.b16 %v506, %v504
    %v695 = vpack.c.b16 %v507, %v505
    %v696 = vpack.c.b16 %v510, %v508
    %v697 = vpack.c.b16 %v511, %v509
    %v698 = vpack.c.b16 %v514, %v512
    %v699 = vpack.c.b16 %v515, %v513
    %v700 = vpack.c.b16 %v518, %v516
    %v701 = vpack.c.b16 %v519, %v517
    %v702 = vpack.c.b16 %v522, %v520
    %v703 = vpack.c.b16 %v523, %v521
    %v704 = vpack.c.b16 %v526, %v524
    %v705 = vpack.c.b16 %v527, %v525
    %v706 = vpack.c.b16 %v530, %v528
    %v707 = vpack.c.b16 %v531, %v529
    %v708 = vpack.c.b16 %v534, %v532
    %v709 = vpack.c.b16 %v535, %v533
    %v710 = vpack.c.b16 %v538, %v536
    %v711 = vpack.c.b16 %v539, %v537
    %v712 = vpack.c.b16 %v542, %v540
    %v713 = vpack.c.b16 %v543, %v541
    %v714 = vpack.c.b16 %v546, %v544
    %v715 = vpack.c.b16 %v547, %v545
    %v716 = vpack.c.b16 %v550, %v548
    %v717 = vpack.c.b16 %v551, %v549
    %v718 = vpack.c.b16 %v554, %v552
    %v719 = vpack.c.b16 %v555, %v553
    %v720 = vpack.c.b16 %v558, %v556
    %v721 = vpack.c.b16 %v559, %v557
    %v722 = vpack.c.b16 %v562, %v560
    %v723 = vpack.c.b16 %v563, %v561
    %v724 = vpack.c.b16 %v566, %v564
    %v725 = vpack.c.b16 %v567, %v565
    %v726 = vpack.c.b16 %v570, %v568
    %v727 = vpack.c.b16 %v571, %v569
    %v728 = vpack.c.b16 %v574, %v572
    %v729 = vpack.c.b16 %v575, %v573
    %v730 = vpack.c.b16 %v578, %v576
    %v731 = vpack.c.b16 %v579, %v577
    %v732 = vpack.c.b16 %v582, %v580
    %v733 = vpack.c.b16 %v583, %v581
    %v734 = vpack.c.b16 %v586, %v584
    %v735 = vpack.c.b16 %v587, %v585
    %v736 = vpack.c.b16 %v590, %v588
    %v737 = vpack.c.b16 %v591, %v589
    %v738 = vpack.c.b16 %v594, %v592
    %v739 = vpack.c.b16 %v595, %v593
    %v740 = vpack.c.b16 %v598, %v596
    %v741 = vpack.c.b16 %v599, %v597
    %v742 = vpack.c.b16 %v602, %v600
    %v743 = vpack.c.b16 %v603, %v601
    %v744 = vpack.c.b16 %v606, %v604
    %v745 = vpack.c.b16 %v607, %v605
    %v746 = vpack.c.b16 %v610, %v608
    %v747 = vpack.c.b16 %v611, %v609
    %v748 = vpack.c.b16 %v614, %v612
    %v749 = vpack.c.b16 %v615, %v613
    %v750 = vpack.c.b16 %v618, %v616
    %v751 = vpack.c.b16 %v619, %v617
    %v752 = vpack.c.b16 %v622, %v620
    %v753 = vpack.c.b16 %v623, %v621
    %v754 = vpack.c.b16 %v626, %v624
    %v755 = vpack.c.b16 %v627, %v625
    %884 = vmatpush.bf16.msra.mxu0 %v642
    %885 = vmatpush.bf16.msra.mxu0 %v640
    %886 = vmatpush.bf16.msra.mxu0 %v638
    %887 = vmatpush.bf16.msra.mxu0 %v636
    %888 = vmatpush.bf16.msra.mxu0 %v634
    %889 = vmatpush.bf16.msra.mxu0 %v632
    %890 = vmatpush.bf16.msra.mxu0 %v630
    %891 = vmatpush.bf16.msra.mxu0 %v628
    %892 = vmatmul.bf16.gmra.mxu0 %v102
    %v893 = vpop.f32.mrf.mxu0
    %v894 = vadd.f32 %v240, %v893
    %v895 = vpop.f32.mrf.mxu0
    %v896 = vadd.f32 %v240, %v895
    %897 = vdwg.mxu0
    %898 = vmatpush.bf16.msra.mxu0 %v658
    %899 = vmatpush.bf16.msra.mxu0 %v656
    %900 = vmatpush.bf16.msra.mxu0 %v654
    %901 = vmatpush.bf16.msra.mxu0 %v652
    %902 = vmatpush.bf16.msra.mxu0 %v650
    %903 = vmatpush.bf16.msra.mxu0 %v648
    %904 = vmatpush.bf16.msra.mxu0 %v646
    %905 = vmatpush.bf16.msra.mxu0 %v644
    %906 = vmatmul.bf16.gmra.mxu0 %v103
    %v907 = vpop.f32.mrf.mxu0
    %v908 = vadd.f32 %v894, %v907
    %v909 = vpop.f32.mrf.mxu0
    %v910 = vadd.f32 %v896, %v909
    %911 = vdwg.mxu0
    %912 = vmatpush.bf16.msra.mxu0 %v674
    %913 = vmatpush.bf16.msra.mxu0 %v672
    %914 = vmatpush.bf16.msra.mxu0 %v670
    %915 = vmatpush.bf16.msra.mxu0 %v668
    %916 = vmatpush.bf16.msra.mxu0 %v666
    %917 = vmatpush.bf16.msra.mxu0 %v664
    %918 = vmatpush.bf16.msra.mxu0 %v662
    %919 = vmatpush.bf16.msra.mxu0 %v660
    %920 = vmatmul.bf16.gmra.mxu0 %v104
    %v921 = vpop.f32.mrf.mxu0
    %v922 = vadd.f32 %v908, %v921
    %v923 = vpop.f32.mrf.mxu0
    %v924 = vadd.f32 %v910, %v923
    %925 = vdwg.mxu0
    %926 = vmatpush.bf16.msra.mxu0 %v690
    %927 = vmatpush.bf16.msra.mxu0 %v688
    %928 = vmatpush.bf16.msra.mxu0 %v686
    %929 = vmatpush.bf16.msra.mxu0 %v684
    %930 = vmatpush.bf16.msra.mxu0 %v682
    %931 = vmatpush.bf16.msra.mxu0 %v680
    %932 = vmatpush.bf16.msra.mxu0 %v678
    %933 = vmatpush.bf16.msra.mxu0 %v676
    %934 = vmatmul.bf16.gmra.mxu0 %v105
    %v935 = vpop.f32.mrf.mxu0
    %v936 = vadd.f32 %v922, %v935
    %v937 = vpop.f32.mrf.mxu0
    %v938 = vadd.f32 %v924, %v937
    %939 = vdwg.mxu0
    %940 = vmatpush.bf16.msra.mxu0 %v706
    %941 = vmatpush.bf16.msra.mxu0 %v704
    %942 = vmatpush.bf16.msra.mxu0 %v702
    %943 = vmatpush.bf16.msra.mxu0 %v700
    %944 = vmatpush.bf16.msra.mxu0 %v698
    %945 = vmatpush.bf16.msra.mxu0 %v696
    %946 = vmatpush.bf16.msra.mxu0 %v694
    %947 = vmatpush.bf16.msra.mxu0 %v692
    %948 = vmatmul.bf16.gmra.mxu0 %v106
    %v949 = vpop.f32.mrf.mxu0
    %v950 = vadd.f32 %v936, %v949
    %v951 = vpop.f32.mrf.mxu0
    %v952 = vadd.f32 %v938, %v951
    %953 = vdwg.mxu0
    %954 = vmatpush.bf16.msra.mxu0 %v722
    %955 = vmatpush.bf16.msra.mxu0 %v720
    %956 = vmatpush.bf16.msra.mxu0 %v718
    %957 = vmatpush.bf16.msra.mxu0 %v716
    %958 = vmatpush.bf16.msra.mxu0 %v714
    %959 = vmatpush.bf16.msra.mxu0 %v712
    %960 = vmatpush.bf16.msra.mxu0 %v710
    %961 = vmatpush.bf16.msra.mxu0 %v708
    %962 = vmatmul.bf16.gmra.mxu0 %v107
    %v963 = vpop.f32.mrf.mxu0
    %v964 = vadd.f32 %v950, %v963
    %v965 = vpop.f32.mrf.mxu0
    %v966 = vadd.f32 %v952, %v965
    %967 = vdwg.mxu0
    %968 = vmatpush.bf16.msra.mxu0 %v738
    %969 = vmatpush.bf16.msra.mxu0 %v736
    %970 = vmatpush.bf16.msra.mxu0 %v734
    %971 = vmatpush.bf16.msra.mxu0 %v732
    %972 = vmatpush.bf16.msra.mxu0 %v730
    %973 = vmatpush.bf16.msra.mxu0 %v728
    %974 = vmatpush.bf16.msra.mxu0 %v726
    %975 = vmatpush.bf16.msra.mxu0 %v724
    %976 = vmatmul.bf16.gmra.mxu0 %v108
    %v977 = vpop.f32.mrf.mxu0
    %v978 = vadd.f32 %v964, %v977
    %v979 = vpop.f32.mrf.mxu0
    %v980 = vadd.f32 %v966, %v979
    %981 = vdwg.mxu0
    %982 = vmatpush.bf16.msra.mxu0 %v754
    %983 = vmatpush.bf16.msra.mxu0 %v752
    %984 = vmatpush.bf16.msra.mxu0 %v750
    %985 = vmatpush.bf16.msra.mxu0 %v748
    %986 = vmatpush.bf16.msra.mxu0 %v746
    %987 = vmatpush.bf16.msra.mxu0 %v744
    %988 = vmatpush.bf16.msra.mxu0 %v742
    %989 = vmatpush.bf16.msra.mxu0 %v740
    %990 = vmatmul.bf16.gmra.mxu0 %v109
    %v991 = vpop.f32.mrf.mxu0
    %v992 = vadd.f32 %v978, %v991
    %v993 = vpop.f32.mrf.mxu0
    %v994 = vadd.f32 %v980, %v993
    %995 = vdwg.mxu0
    %996 = vmatpush.bf16.msra.mxu0 %v643
    %997 = vmatpush.bf16.msra.mxu0 %v641
    %998 = vmatpush.bf16.msra.mxu0 %v639
    %999 = vmatpush.bf16.msra.mxu0 %v637
    %1000 = vmatpush.bf16.msra.mxu0 %v635
    %1001 = vmatpush.bf16.msra.mxu0 %v633
    %1002 = vmatpush.bf16.msra.mxu0 %v631
    %1003 = vmatpush.bf16.msra.mxu0 %v629
    %1004 = vmatmul.bf16.gmra.mxu0 %v102
    %v1005 = vpop.f32.mrf.mxu0
    %v1006 = vadd.f32 %v241, %v1005
    %v1007 = vpop.f32.mrf.mxu0
    %v1008 = vadd.f32 %v241, %v1007
    %1009 = vdwg.mxu0
    %1010 = vmatpush.bf16.msra.mxu0 %v659
    %1011 = vmatpush.bf16.msra.mxu0 %v657
    %1012 = vmatpush.bf16.msra.mxu0 %v655
    %1013 = vmatpush.bf16.msra.mxu0 %v653
    %1014 = vmatpush.bf16.msra.mxu0 %v651
    %1015 = vmatpush.bf16.msra.mxu0 %v649
    %1016 = vmatpush.bf16.msra.mxu0 %v647
    %1017 = vmatpush.bf16.msra.mxu0 %v645
    %1018 = vmatmul.bf16.gmra.mxu0 %v103
    %v1019 = vpop.f32.mrf.mxu0
    %v1020 = vadd.f32 %v1006, %v1019
    %v1021 = vpop.f32.mrf.mxu0
    %v1022 = vadd.f32 %v1008, %v1021
    %1023 = vdwg.mxu0
    %1024 = vmatpush.bf16.msra.mxu0 %v675
    %1025 = vmatpush.bf16.msra.mxu0 %v673
    %1026 = vmatpush.bf16.msra.mxu0 %v671
    %1027 = vmatpush.bf16.msra.mxu0 %v669
    %1028 = vmatpush.bf16.msra.mxu0 %v667
    %1029 = vmatpush.bf16.msra.mxu0 %v665
    %1030 = vmatpush.bf16.msra.mxu0 %v663
    %1031 = vmatpush.bf16.msra.mxu0 %v661
    %1032 = vmatmul.bf16.gmra.mxu0 %v104
    %v1033 = vpop.f32.mrf.mxu0
    %v1034 = vadd.f32 %v1020, %v1033
    %v1035 = vpop.f32.mrf.mxu0
    %v1036 = vadd.f32 %v1022, %v1035
    %1037 = vdwg.mxu0
    %1038 = vmatpush.bf16.msra.mxu0 %v691
    %1039 = vmatpush.bf16.msra.mxu0 %v689
    %1040 = vmatpush.bf16.msra.mxu0 %v687
    %1041 = vmatpush.bf16.msra.mxu0 %v685
    %1042 = vmatpush.bf16.msra.mxu0 %v683
    %1043 = vmatpush.bf16.msra.mxu0 %v681
    %1044 = vmatpush.bf16.msra.mxu0 %v679
    %1045 = vmatpush.bf16.msra.mxu0 %v677
    %1046 = vmatmul.bf16.gmra.mxu0 %v105
    %v1047 = vpop.f32.mrf.mxu0
    %v1048 = vadd.f32 %v1034, %v1047
    %v1049 = vpop.f32.mrf.mxu0
    %v1050 = vadd.f32 %v1036, %v1049
    %1051 = vdwg.mxu0
    %1052 = vmatpush.bf16.msra.mxu0 %v707
    %1053 = vmatpush.bf16.msra.mxu0 %v705
    %1054 = vmatpush.bf16.msra.mxu0 %v703
    %1055 = vmatpush.bf16.msra.mxu0 %v701
    %1056 = vmatpush.bf16.msra.mxu0 %v699
    %1057 = vmatpush.bf16.msra.mxu0 %v697
    %1058 = vmatpush.bf16.msra.mxu0 %v695
    %1059 = vmatpush.bf16.msra.mxu0 %v693
    %1060 = vmatmul.bf16.gmra.mxu0 %v106
    %v1061 = vpop.f32.mrf.mxu0
    %v1062 = vadd.f32 %v1048, %v1061
    %v1063 = vpop.f32.mrf.mxu0
    %v1064 = vadd.f32 %v1050, %v1063
    %1065 = vdwg.mxu0
    %1066 = vmatpush.bf16.msra.mxu0 %v723
    %1067 = vmatpush.bf16.msra.mxu0 %v721
    %1068 = vmatpush.bf16.msra.mxu0 %v719
    %1069 = vmatpush.bf16.msra.mxu0 %v717
    %1070 = vmatpush.bf16.msra.mxu0 %v715
    %1071 = vmatpush.bf16.msra.mxu0 %v713
    %1072 = vmatpush.bf16.msra.mxu0 %v711
    %1073 = vmatpush.bf16.msra.mxu0 %v709
    %1074 = vmatmul.bf16.gmra.mxu0 %v107
    %v1075 = vpop.f32.mrf.mxu0
    %v1076 = vadd.f32 %v1062, %v1075
    %v1077 = vpop.f32.mrf.mxu0
    %v1078 = vadd.f32 %v1064, %v1077
    %1079 = vdwg.mxu0
    %1080 = vmatpush.bf16.msra.mxu0 %v739
    %1081 = vmatpush.bf16.msra.mxu0 %v737
    %1082 = vmatpush.bf16.msra.mxu0 %v735
    %1083 = vmatpush.bf16.msra.mxu0 %v733
    %1084 = vmatpush.bf16.msra.mxu0 %v731
    %1085 = vmatpush.bf16.msra.mxu0 %v729
    %1086 = vmatpush.bf16.msra.mxu0 %v727
    %1087 = vmatpush.bf16.msra.mxu0 %v725
    %1088 = vmatmul.bf16.gmra.mxu0 %v108
    %v1089 = vpop.f32.mrf.mxu0
    %v1090 = vadd.f32 %v1076, %v1089
    %v1091 = vpop.f32.mrf.mxu0
    %v1092 = vadd.f32 %v1078, %v1091
    %1093 = vdwg.mxu0
    %1094 = vmatpush.bf16.msra.mxu0 %v755
    %1095 = vmatpush.bf16.msra.mxu0 %v753
    %1096 = vmatpush.bf16.msra.mxu0 %v751
    %1097 = vmatpush.bf16.msra.mxu0 %v749
    %1098 = vmatpush.bf16.msra.mxu0 %v747
    %1099 = vmatpush.bf16.msra.mxu0 %v745
    %1100 = vmatpush.bf16.msra.mxu0 %v743
    %1101 = vmatpush.bf16.msra.mxu0 %v741
    %1102 = vmatmul.bf16.gmra.mxu0 %v109
    %v1103 = vpop.f32.mrf.mxu0
    %v1104 = vadd.f32 %v1090, %v1103
    %v1105 = vpop.f32.mrf.mxu0
    %v1106 = vadd.f32 %v1092, %v1105
    %1107 = vdwg.mxu0
    %v1108 = vld [vmem:[%s1] sm:$0xff]
    %v1109 = vld [vmem:[%s1 + $0x8] sm:$0xff]
    %v1110 = vmul.f32 %v1104, 1.442695
    %v1111 = vpow.pop %v1110
    %v1112 = vmul.f32 %v1106, 1.442695
    %v1113 = vpow.pop %v1112
    %v1114 = vmul.f32 %v1111, %v1108
    %v1115 = vmul.f32 %v1113, %v1109
    %v1116 = vadd.f32 %v992, %v1114
    %v1117 = vadd.f32 %v994, %v1115
    %v1118 = vpack.c.bf16 %v1117, %v1116
    %v1119 = vld [vmem:[#allocation4] sm:$0xff]
    %v1120 = vld [vmem:[#allocation4 + $0x8] sm:$0xff]
    %v1121 = vld [vmem:[#allocation4 + $0x10] sm:$0xff]
    %v1122 = vld [vmem:[#allocation4 + $0x18] sm:$0xff]
    %v1123 = vld [vmem:[#allocation4 + $0x20] sm:$0xff]
    %v1124 = vld [vmem:[#allocation4 + $0x28] sm:$0xff]
    %v1125 = vld [vmem:[#allocation4 + $0x30] sm:$0xff]
    %v1126 = vld [vmem:[#allocation4 + $0x38] sm:$0xff]
    %v1127 = vld [vmem:[#allocation4 + $0x40] sm:$0xff]
    %v1128 = vld [vmem:[#allocation4 + $0x48] sm:$0xff]
    %v1129 = vld [vmem:[#allocation4 + $0x50] sm:$0xff]
    %v1130 = vld [vmem:[#allocation4 + $0x58] sm:$0xff]
    %v1131 = vld [vmem:[#allocation4 + $0x60] sm:$0xff]
    %v1132 = vld [vmem:[#allocation4 + $0x68] sm:$0xff]
    %v1133 = vld [vmem:[#allocation4 + $0x70] sm:$0xff]
    %v1134 = vld [vmem:[#allocation4 + $0x78] sm:$0xff]
    %v1135 = vld [vmem:[#allocation4 + $0x80] sm:$0xff]
    %v1136 = vld [vmem:[#allocation4 + $0x88] sm:$0xff]
    %v1137 = vld [vmem:[#allocation4 + $0x90] sm:$0xff]
    %v1138 = vld [vmem:[#allocation4 + $0x98] sm:$0xff]
    %v1139 = vld [vmem:[#allocation4 + $0xa0] sm:$0xff]
    %v1140 = vld [vmem:[#allocation4 + $0xa8] sm:$0xff]
    %v1141 = vld [vmem:[#allocation4 + $0xb0] sm:$0xff]
    %v1142 = vld [vmem:[#allocation4 + $0xb8] sm:$0xff]
    %v1143 = vld [vmem:[#allocation4 + $0xc0] sm:$0xff]
    %v1144 = vld [vmem:[#allocation4 + $0xc8] sm:$0xff]
    %v1145 = vld [vmem:[#allocation4 + $0xd0] sm:$0xff]
    %v1146 = vld [vmem:[#allocation4 + $0xd8] sm:$0xff]
    %v1147 = vld [vmem:[#allocation4 + $0xe0] sm:$0xff]
    %v1148 = vld [vmem:[#allocation4 + $0xe8] sm:$0xff]
    %v1149 = vld [vmem:[#allocation4 + $0xf0] sm:$0xff]
    %v1150 = vld [vmem:[#allocation4 + $0xf8] sm:$0xff]
    %v1151 = vld [vmem:[#allocation4 + $0x100] sm:$0xff]
    %v1152 = vld [vmem:[#allocation4 + $0x108] sm:$0xff]
    %v1153 = vld [vmem:[#allocation4 + $0x110] sm:$0xff]
    %v1154 = vld [vmem:[#allocation4 + $0x118] sm:$0xff]
    %v1155 = vld [vmem:[#allocation4 + $0x120] sm:$0xff]
    %v1156 = vld [vmem:[#allocation4 + $0x128] sm:$0xff]
    %v1157 = vld [vmem:[#allocation4 + $0x130] sm:$0xff]
    %v1158 = vld [vmem:[#allocation4 + $0x138] sm:$0xff]
    %v1159 = vld [vmem:[#allocation4 + $0x140] sm:$0xff]
    %v1160 = vld [vmem:[#allocation4 + $0x148] sm:$0xff]
    %v1161 = vld [vmem:[#allocation4 + $0x150] sm:$0xff]
    %v1162 = vld [vmem:[#allocation4 + $0x158] sm:$0xff]
    %v1163 = vld [vmem:[#allocation4 + $0x160] sm:$0xff]
    %v1164 = vld [vmem:[#allocation4 + $0x168] sm:$0xff]
    %v1165 = vld [vmem:[#allocation4 + $0x170] sm:$0xff]
    %v1166 = vld [vmem:[#allocation4 + $0x178] sm:$0xff]
    %v1167 = vld [vmem:[#allocation4 + $0x180] sm:$0xff]
    %v1168 = vld [vmem:[#allocation4 + $0x188] sm:$0xff]
    %v1169 = vld [vmem:[#allocation4 + $0x190] sm:$0xff]
    %v1170 = vld [vmem:[#allocation4 + $0x198] sm:$0xff]
    %v1171 = vld [vmem:[#allocation4 + $0x1a0] sm:$0xff]
    %v1172 = vld [vmem:[#allocation4 + $0x1a8] sm:$0xff]
    %v1173 = vld [vmem:[#allocation4 + $0x1b0] sm:$0xff]
    %v1174 = vld [vmem:[#allocation4 + $0x1b8] sm:$0xff]
    %v1175 = vld [vmem:[#allocation4 + $0x1c0] sm:$0xff]
    %v1176 = vld [vmem:[#allocation4 + $0x1c8] sm:$0xff]
    %v1177 = vld [vmem:[#allocation4 + $0x1d0] sm:$0xff]
    %v1178 = vld [vmem:[#allocation4 + $0x1d8] sm:$0xff]
    %v1179 = vld [vmem:[#allocation4 + $0x1e0] sm:$0xff]
    %v1180 = vld [vmem:[#allocation4 + $0x1e8] sm:$0xff]
    %v1181 = vld [vmem:[#allocation4 + $0x1f0] sm:$0xff]
    %v1182 = vld [vmem:[#allocation4 + $0x1f8] sm:$0xff]
    %v1183 = vld [vmem:[%s7] sm:$0xff]
    %v1185 = vperm.slane %v1183, 0
    %v1186 = vperm.slane %v1183, 1
    %v1187 = vperm.slane %v1183, 2
    %v1188 = vperm.slane %v1183, 3
    %v1189 = vperm.slane %v1183, 4
    %v1190 = vperm.slane %v1183, 5
    %v1191 = vperm.slane %v1183, 6
    %v1192 = vperm.slane %v1183, 7
    %v1265 = vunpack.c.l.b16 %v1119
    %v1266 = vunpack.c.h.b16 %v1119
    %v1267 = vunpack.c.l.b16 %v1120
    %v1268 = vunpack.c.h.b16 %v1120
    %v1269 = vunpack.c.l.b16 %v1121
    %v1270 = vunpack.c.h.b16 %v1121
    %v1271 = vunpack.c.l.b16 %v1122
    %v1272 = vunpack.c.h.b16 %v1122
    %v1273 = vunpack.c.l.b16 %v1123
    %v1274 = vunpack.c.h.b16 %v1123
    %v1275 = vunpack.c.l.b16 %v1124
    %v1276 = vunpack.c.h.b16 %v1124
    %v1277 = vunpack.c.l.b16 %v1125
    %v1278 = vunpack.c.h.b16 %v1125
    %v1279 = vunpack.c.l.b16 %v1126
    %v1280 = vunpack.c.h.b16 %v1126
    %v1281 = vunpack.c.l.b16 %v1127
    %v1282 = vunpack.c.h.b16 %v1127
    %v1283 = vunpack.c.l.b16 %v1128
    %v1284 = vunpack.c.h.b16 %v1128
    %v1285 = vunpack.c.l.b16 %v1129
    %v1286 = vunpack.c.h.b16 %v1129
    %v1287 = vunpack.c.l.b16 %v1130
    %v1288 = vunpack.c.h.b16 %v1130
    %v1289 = vunpack.c.l.b16 %v1131
    %v1290 = vunpack.c.h.b16 %v1131
    %v1291 = vunpack.c.l.b16 %v1132
    %v1292 = vunpack.c.h.b16 %v1132
    %v1293 = vunpack.c.l.b16 %v1133
    %v1294 = vunpack.c.h.b16 %v1133
    %v1295 = vunpack.c.l.b16 %v1134
    %v1296 = vunpack.c.h.b16 %v1134
    %v1297 = vunpack.c.l.b16 %v1135
    %v1298 = vunpack.c.h.b16 %v1135
    %v1299 = vunpack.c.l.b16 %v1136
    %v1300 = vunpack.c.h.b16 %v1136
    %v1301 = vunpack.c.l.b16 %v1137
    %v1302 = vunpack.c.h.b16 %v1137
    %v1303 = vunpack.c.l.b16 %v1138
    %v1304 = vunpack.c.h.b16 %v1138
    %v1305 = vunpack.c.l.b16 %v1139
    %v1306 = vunpack.c.h.b16 %v1139
    %v1307 = vunpack.c.l.b16 %v1140
    %v1308 = vunpack.c.h.b16 %v1140
    %v1309 = vunpack.c.l.b16 %v1141
    %v1310 = vunpack.c.h.b16 %v1141
    %v1311 = vunpack.c.l.b16 %v1142
    %v1312 = vunpack.c.h.b16 %v1142
    %v1313 = vunpack.c.l.b16 %v1143
    %v1314 = vunpack.c.h.b16 %v1143
    %v1315 = vunpack.c.l.b16 %v1144
    %v1316 = vunpack.c.h.b16 %v1144
    %v1317 = vunpack.c.l.b16 %v1145
    %v1318 = vunpack.c.h.b16 %v1145
    %v1319 = vunpack.c.l.b16 %v1146
    %v1320 = vunpack.c.h.b16 %v1146
    %v1321 = vunpack.c.l.b16 %v1147
    %v1322 = vunpack.c.h.b16 %v1147
    %v1323 = vunpack.c.l.b16 %v1148
    %v1324 = vunpack.c.h.b16 %v1148
    %v1325 = vunpack.c.l.b16 %v1149
    %v1326 = vunpack.c.h.b16 %v1149
    %v1327 = vunpack.c.l.b16 %v1150
    %v1328 = vunpack.c.h.b16 %v1150
    %v1329 = vunpack.c.l.b16 %v1151
    %v1330 = vunpack.c.h.b16 %v1151
    %v1331 = vunpack.c.l.b16 %v1152
    %v1332 = vunpack.c.h.b16 %v1152
    %v1333 = vunpack.c.l.b16 %v1153
    %v1334 = vunpack.c.h.b16 %v1153
    %v1335 = vunpack.c.l.b16 %v1154
    %v1336 = vunpack.c.h.b16 %v1154
    %v1337 = vunpack.c.l.b16 %v1155
    %v1338 = vunpack.c.h.b16 %v1155
    %v1339 = vunpack.c.l.b16 %v1156
    %v1340 = vunpack.c.h.b16 %v1156
    %v1341 = vunpack.c.l.b16 %v1157
    %v1342 = vunpack.c.h.b16 %v1157
    %v1343 = vunpack.c.l.b16 %v1158
    %v1344 = vunpack.c.h.b16 %v1158
    %v1345 = vunpack.c.l.b16 %v1159
    %v1346 = vunpack.c.h.b16 %v1159
    %v1347 = vunpack.c.l.b16 %v1160
    %v1348 = vunpack.c.h.b16 %v1160
    %v1349 = vunpack.c.l.b16 %v1161
    %v1350 = vunpack.c.h.b16 %v1161
    %v1351 = vunpack.c.l.b16 %v1162
    %v1352 = vunpack.c.h.b16 %v1162
    %v1353 = vunpack.c.l.b16 %v1163
    %v1354 = vunpack.c.h.b16 %v1163
    %v1355 = vunpack.c.l.b16 %v1164
    %v1356 = vunpack.c.h.b16 %v1164
    %v1357 = vunpack.c.l.b16 %v1165
    %v1358 = vunpack.c.h.b16 %v1165
    %v1359 = vunpack.c.l.b16 %v1166
    %v1360 = vunpack.c.h.b16 %v1166
    %v1361 = vunpack.c.l.b16 %v1167
    %v1362 = vunpack.c.h.b16 %v1167
    %v1363 = vunpack.c.l.b16 %v1168
    %v1364 = vunpack.c.h.b16 %v1168
    %v1365 = vunpack.c.l.b16 %v1169
    %v1366 = vunpack.c.h.b16 %v1169
    %v1367 = vunpack.c.l.b16 %v1170
    %v1368 = vunpack.c.h.b16 %v1170
    %v1369 = vunpack.c.l.b16 %v1171
    %v1370 = vunpack.c.h.b16 %v1171
    %v1371 = vunpack.c.l.b16 %v1172
    %v1372 = vunpack.c.h.b16 %v1172
    %v1373 = vunpack.c.l.b16 %v1173
    %v1374 = vunpack.c.h.b16 %v1173
    %v1375 = vunpack.c.l.b16 %v1174
    %v1376 = vunpack.c.h.b16 %v1174
    %v1377 = vunpack.c.l.b16 %v1175
    %v1378 = vunpack.c.h.b16 %v1175
    %v1379 = vunpack.c.l.b16 %v1176
    %v1380 = vunpack.c.h.b16 %v1176
    %v1381 = vunpack.c.l.b16 %v1177
    %v1382 = vunpack.c.h.b16 %v1177
    %v1383 = vunpack.c.l.b16 %v1178
    %v1384 = vunpack.c.h.b16 %v1178
    %v1385 = vunpack.c.l.b16 %v1179
    %v1386 = vunpack.c.h.b16 %v1179
    %v1387 = vunpack.c.l.b16 %v1180
    %v1388 = vunpack.c.h.b16 %v1180
    %v1389 = vunpack.c.l.b16 %v1181
    %v1390 = vunpack.c.h.b16 %v1181
    %v1391 = vunpack.c.l.b16 %v1182
    %v1392 = vunpack.c.h.b16 %v1182
    %v1393 = vpack.c.b16 %v1273, %v1265
    %v1394 = vpack.c.b16 %v1274, %v1266
    %v1395 = vpack.c.b16 %v1275, %v1267
    %v1396 = vpack.c.b16 %v1276, %v1268
    %v1397 = vpack.c.b16 %v1277, %v1269
    %v1398 = vpack.c.b16 %v1278, %v1270
    %v1399 = vpack.c.b16 %v1279, %v1271
    %v1400 = vpack.c.b16 %v1280, %v1272
    %v1401 = vpack.c.b16 %v1289, %v1281
    %v1402 = vpack.c.b16 %v1290, %v1282
    %v1403 = vpack.c.b16 %v1291, %v1283
    %v1404 = vpack.c.b16 %v1292, %v1284
    %v1405 = vpack.c.b16 %v1293, %v1285
    %v1406 = vpack.c.b16 %v1294, %v1286
    %v1407 = vpack.c.b16 %v1295, %v1287
    %v1408 = vpack.c.b16 %v1296, %v1288
    %v1409 = vpack.c.b16 %v1305, %v1297
    %v1410 = vpack.c.b16 %v1306, %v1298
    %v1411 = vpack.c.b16 %v1307, %v1299
    %v1412 = vpack.c.b16 %v1308, %v1300
    %v1413 = vpack.c.b16 %v1309, %v1301
    %v1414 = vpack.c.b16 %v1310, %v1302
    %v1415 = vpack.c.b16 %v1311, %v1303
    %v1416 = vpack.c.b16 %v1312, %v1304
    %v1417 = vpack.c.b16 %v1321, %v1313
    %v1418 = vpack.c.b16 %v1322, %v1314
    %v1419 = vpack.c.b16 %v1323, %v1315
    %v1420 = vpack.c.b16 %v1324, %v1316
    %v1421 = vpack.c.b16 %v1325, %v1317
    %v1422 = vpack.c.b16 %v1326, %v1318
    %v1423 = vpack.c.b16 %v1327, %v1319
    %v1424 = vpack.c.b16 %v1328, %v1320
    %v1425 = vpack.c.b16 %v1337, %v1329
    %v1426 = vpack.c.b16 %v1338, %v1330
    %v1427 = vpack.c.b16 %v1339, %v1331
    %v1428 = vpack.c.b16 %v1340, %v1332
    %v1429 = vpack.c.b16 %v1341, %v1333
    %v1430 = vpack.c.b16 %v1342, %v1334
    %v1431 = vpack.c.b16 %v1343, %v1335
    %v1432 = vpack.c.b16 %v1344, %v1336
    %v1433 = vpack.c.b16 %v1353, %v1345
    %v1434 = vpack.c.b16 %v1354, %v1346
    %v1435 = vpack.c.b16 %v1355, %v1347
    %v1436 = vpack.c.b16 %v1356, %v1348
    %v1437 = vpack.c.b16 %v1357, %v1349
    %v1438 = vpack.c.b16 %v1358, %v1350
    %v1439 = vpack.c.b16 %v1359, %v1351
    %v1440 = vpack.c.b16 %v1360, %v1352
    %v1441 = vpack.c.b16 %v1369, %v1361
    %v1442 = vpack.c.b16 %v1370, %v1362
    %v1443 = vpack.c.b16 %v1371, %v1363
    %v1444 = vpack.c.b16 %v1372, %v1364
    %v1445 = vpack.c.b16 %v1373, %v1365
    %v1446 = vpack.c.b16 %v1374, %v1366
    %v1447 = vpack.c.b16 %v1375, %v1367
    %v1448 = vpack.c.b16 %v1376, %v1368
    %v1449 = vpack.c.b16 %v1385, %v1377
    %v1450 = vpack.c.b16 %v1386, %v1378
    %v1451 = vpack.c.b16 %v1387, %v1379
    %v1452 = vpack.c.b16 %v1388, %v1380
    %v1453 = vpack.c.b16 %v1389, %v1381
    %v1454 = vpack.c.b16 %v1390, %v1382
    %v1455 = vpack.c.b16 %v1391, %v1383
    %v1456 = vpack.c.b16 %v1392, %v1384
    %1521 = vmatpush.bf16.msra.mxu0 %v1449
    %1522 = vmatpush.bf16.msra.mxu0 %v1441
    %1523 = vmatpush.bf16.msra.mxu0 %v1433
    %1524 = vmatpush.bf16.msra.mxu0 %v1425
    %1525 = vmatpush.bf16.msra.mxu0 %v1417
    %1526 = vmatpush.bf16.msra.mxu0 %v1409
    %1527 = vmatpush.bf16.msra.mxu0 %v1401
    %1528 = vmatpush.bf16.msra.mxu0 %v1393
    %1529 = vmatmul.bf16.gmra.mxu0 %v1118
    %v1530 = vpop.f32.mrf.mxu0
    %v1531 = vadd.f32 %v1185, %v1530
    %v1532 = vpop.f32.mrf.mxu0
    %v1533 = vadd.f32 %v1185, %v1532
    %1534 = vdwg.mxu0
    %1535 = vmatpush.bf16.msra.mxu0 %v1450
    %1536 = vmatpush.bf16.msra.mxu0 %v1442
    %1537 = vmatpush.bf16.msra.mxu0 %v1434
    %1538 = vmatpush.bf16.msra.mxu0 %v1426
    %1539 = vmatpush.bf16.msra.mxu0 %v1418
    %1540 = vmatpush.bf16.msra.mxu0 %v1410
    %1541 = vmatpush.bf16.msra.mxu0 %v1402
    %1542 = vmatpush.bf16.msra.mxu0 %v1394
    %1543 = vmatmul.bf16.gmra.mxu0 %v1118
    %v1544 = vpop.f32.mrf.mxu0
    %v1545 = vadd.f32 %v1186, %v1544
    %v1546 = vpop.f32.mrf.mxu0
    %v1547 = vadd.f32 %v1186, %v1546
    %1548 = vdwg.mxu0
    %1549 = vmatpush.bf16.msra.mxu0 %v1451
    %1550 = vmatpush.bf16.msra.mxu0 %v1443
    %1551 = vmatpush.bf16.msra.mxu0 %v1435
    %1552 = vmatpush.bf16.msra.mxu0 %v1427
    %1553 = vmatpush.bf16.msra.mxu0 %v1419
    %1554 = vmatpush.bf16.msra.mxu0 %v1411
    %1555 = vmatpush.bf16.msra.mxu0 %v1403
    %1556 = vmatpush.bf16.msra.mxu0 %v1395
    %1557 = vmatmul.bf16.gmra.mxu0 %v1118
    %v1558 = vpop.f32.mrf.mxu0
    %v1559 = vadd.f32 %v1187, %v1558
    %v1560 = vpop.f32.mrf.mxu0
    %v1561 = vadd.f32 %v1187, %v1560
    %1562 = vdwg.mxu0
    %1563 = vmatpush.bf16.msra.mxu0 %v1452
    %1564 = vmatpush.bf16.msra.mxu0 %v1444
    %1565 = vmatpush.bf16.msra.mxu0 %v1436
    %1566 = vmatpush.bf16.msra.mxu0 %v1428
    %1567 = vmatpush.bf16.msra.mxu0 %v1420
    %1568 = vmatpush.bf16.msra.mxu0 %v1412
    %1569 = vmatpush.bf16.msra.mxu0 %v1404
    %1570 = vmatpush.bf16.msra.mxu0 %v1396
    %1571 = vmatmul.bf16.gmra.mxu0 %v1118
    %v1572 = vpop.f32.mrf.mxu0
    %v1573 = vadd.f32 %v1188, %v1572
    %v1574 = vpop.f32.mrf.mxu0
    %v1575 = vadd.f32 %v1188, %v1574
    %1576 = vdwg.mxu0
    %1577 = vmatpush.bf16.msra.mxu0 %v1453
    %1578 = vmatpush.bf16.msra.mxu0 %v1445
    %1579 = vmatpush.bf16.msra.mxu0 %v1437
    %1580 = vmatpush.bf16.msra.mxu0 %v1429
    %1581 = vmatpush.bf16.msra.mxu0 %v1421
    %1582 = vmatpush.bf16.msra.mxu0 %v1413
    %1583 = vmatpush.bf16.msra.mxu0 %v1405
    %1584 = vmatpush.bf16.msra.mxu0 %v1397
    %1585 = vmatmul.bf16.gmra.mxu0 %v1118
    %v1586 = vpop.f32.mrf.mxu0
    %v1587 = vadd.f32 %v1189, %v1586
    %v1588 = vpop.f32.mrf.mxu0
    %v1589 = vadd.f32 %v1189, %v1588
    %1590 = vdwg.mxu0
    %1591 = vmatpush.bf16.msra.mxu0 %v1454
    %1592 = vmatpush.bf16.msra.mxu0 %v1446
    %1593 = vmatpush.bf16.msra.mxu0 %v1438
    %1594 = vmatpush.bf16.msra.mxu0 %v1430
    %1595 = vmatpush.bf16.msra.mxu0 %v1422
    %1596 = vmatpush.bf16.msra.mxu0 %v1414
    %1597 = vmatpush.bf16.msra.mxu0 %v1406
    %1598 = vmatpush.bf16.msra.mxu0 %v1398
    %1599 = vmatmul.bf16.gmra.mxu0 %v1118
    %v1600 = vpop.f32.mrf.mxu0
    %v1601 = vadd.f32 %v1190, %v1600
    %v1602 = vpop.f32.mrf.mxu0
    %v1603 = vadd.f32 %v1190, %v1602
    %1604 = vdwg.mxu0
    %1605 = vmatpush.bf16.msra.mxu0 %v1455
    %1606 = vmatpush.bf16.msra.mxu0 %v1447
    %1607 = vmatpush.bf16.msra.mxu0 %v1439
    %1608 = vmatpush.bf16.msra.mxu0 %v1431
    %1609 = vmatpush.bf16.msra.mxu0 %v1423
    %1610 = vmatpush.bf16.msra.mxu0 %v1415
    %1611 = vmatpush.bf16.msra.mxu0 %v1407
    %1612 = vmatpush.bf16.msra.mxu0 %v1399
    %1613 = vmatmul.bf16.gmra.mxu0 %v1118
    %v1614 = vpop.f32.mrf.mxu0
    %v1615 = vadd.f32 %v1191, %v1614
    %v1616 = vpop.f32.mrf.mxu0
    %v1617 = vadd.f32 %v1191, %v1616
    %1618 = vdwg.mxu0
    %1619 = vmatpush.bf16.msra.mxu0 %v1456
    %1620 = vmatpush.bf16.msra.mxu0 %v1448
    %1621 = vmatpush.bf16.msra.mxu0 %v1440
    %1622 = vmatpush.bf16.msra.mxu0 %v1432
    %1623 = vmatpush.bf16.msra.mxu0 %v1424
    %1624 = vmatpush.bf16.msra.mxu0 %v1416
    %1625 = vmatpush.bf16.msra.mxu0 %v1408
    %1626 = vmatpush.bf16.msra.mxu0 %v1400
    %1627 = vmatmul.bf16.gmra.mxu0 %v1118
    %v1628 = vpop.f32.mrf.mxu0
    %v1629 = vadd.f32 %v1192, %v1628
    %v1630 = vpop.f32.mrf.mxu0
    %v1631 = vadd.f32 %v1192, %v1630
    %1632 = vdwg.mxu0
    %v1633 = vld [vmem:[#allocation6] sm:$0xff]
    %v1634 = vld [vmem:[#allocation6 + $0x8] sm:$0xff]
    %v1635 = vld [vmem:[#allocation6 + $0x10] sm:$0xff]
    %v1636 = vld [vmem:[#allocation6 + $0x18] sm:$0xff]
    %v1637 = vld [vmem:[#allocation6 + $0x20] sm:$0xff]
    %v1638 = vld [vmem:[#allocation6 + $0x28] sm:$0xff]
    %v1639 = vld [vmem:[#allocation6 + $0x30] sm:$0xff]
    %v1640 = vld [vmem:[#allocation6 + $0x38] sm:$0xff]
    %v1641 = vld [vmem:[#allocation6 + $0x40] sm:$0xff]
    %v1642 = vld [vmem:[#allocation6 + $0x48] sm:$0xff]
    %v1643 = vld [vmem:[#allocation6 + $0x50] sm:$0xff]
    %v1644 = vld [vmem:[#allocation6 + $0x58] sm:$0xff]
    %v1645 = vld [vmem:[#allocation6 + $0x60] sm:$0xff]
    %v1646 = vld [vmem:[#allocation6 + $0x68] sm:$0xff]
    %v1647 = vld [vmem:[#allocation6 + $0x70] sm:$0xff]
    %v1648 = vld [vmem:[#allocation6 + $0x78] sm:$0xff]
    %v1649 = vld [vmem:[#allocation6 + $0x80] sm:$0xff]
    %v1650 = vld [vmem:[#allocation6 + $0x88] sm:$0xff]
    %v1651 = vld [vmem:[#allocation6 + $0x90] sm:$0xff]
    %v1652 = vld [vmem:[#allocation6 + $0x98] sm:$0xff]
    %v1653 = vld [vmem:[#allocation6 + $0xa0] sm:$0xff]
    %v1654 = vld [vmem:[#allocation6 + $0xa8] sm:$0xff]
    %v1655 = vld [vmem:[#allocation6 + $0xb0] sm:$0xff]
    %v1656 = vld [vmem:[#allocation6 + $0xb8] sm:$0xff]
    %v1657 = vld [vmem:[#allocation6 + $0xc0] sm:$0xff]
    %v1658 = vld [vmem:[#allocation6 + $0xc8] sm:$0xff]
    %v1659 = vld [vmem:[#allocation6 + $0xd0] sm:$0xff]
    %v1660 = vld [vmem:[#allocation6 + $0xd8] sm:$0xff]
    %v1661 = vld [vmem:[#allocation6 + $0xe0] sm:$0xff]
    %v1662 = vld [vmem:[#allocation6 + $0xe8] sm:$0xff]
    %v1663 = vld [vmem:[#allocation6 + $0xf0] sm:$0xff]
    %v1664 = vld [vmem:[#allocation6 + $0xf8] sm:$0xff]
    %v1665 = vld [vmem:[#allocation6 + $0x100] sm:$0xff]
    %v1666 = vld [vmem:[#allocation6 + $0x108] sm:$0xff]
    %v1667 = vld [vmem:[#allocation6 + $0x110] sm:$0xff]
    %v1668 = vld [vmem:[#allocation6 + $0x118] sm:$0xff]
    %v1669 = vld [vmem:[#allocation6 + $0x120] sm:$0xff]
    %v1670 = vld [vmem:[#allocation6 + $0x128] sm:$0xff]
    %v1671 = vld [vmem:[#allocation6 + $0x130] sm:$0xff]
    %v1672 = vld [vmem:[#allocation6 + $0x138] sm:$0xff]
    %v1673 = vld [vmem:[#allocation6 + $0x140] sm:$0xff]
    %v1674 = vld [vmem:[#allocation6 + $0x148] sm:$0xff]
    %v1675 = vld [vmem:[#allocation6 + $0x150] sm:$0xff]
    %v1676 = vld [vmem:[#allocation6 + $0x158] sm:$0xff]
    %v1677 = vld [vmem:[#allocation6 + $0x160] sm:$0xff]
    %v1678 = vld [vmem:[#allocation6 + $0x168] sm:$0xff]
    %v1679 = vld [vmem:[#allocation6 + $0x170] sm:$0xff]
    %v1680 = vld [vmem:[#allocation6 + $0x178] sm:$0xff]
    %v1681 = vld [vmem:[#allocation6 + $0x180] sm:$0xff]
    %v1682 = vld [vmem:[#allocation6 + $0x188] sm:$0xff]
    %v1683 = vld [vmem:[#allocation6 + $0x190] sm:$0xff]
    %v1684 = vld [vmem:[#allocation6 + $0x198] sm:$0xff]
    %v1685 = vld [vmem:[#allocation6 + $0x1a0] sm:$0xff]
    %v1686 = vld [vmem:[#allocation6 + $0x1a8] sm:$0xff]
    %v1687 = vld [vmem:[#allocation6 + $0x1b0] sm:$0xff]
    %v1688 = vld [vmem:[#allocation6 + $0x1b8] sm:$0xff]
    %v1689 = vld [vmem:[#allocation6 + $0x1c0] sm:$0xff]
    %v1690 = vld [vmem:[#allocation6 + $0x1c8] sm:$0xff]
    %v1691 = vld [vmem:[#allocation6 + $0x1d0] sm:$0xff]
    %v1692 = vld [vmem:[#allocation6 + $0x1d8] sm:$0xff]
    %v1693 = vld [vmem:[#allocation6 + $0x1e0] sm:$0xff]
    %v1694 = vld [vmem:[#allocation6 + $0x1e8] sm:$0xff]
    %v1695 = vld [vmem:[#allocation6 + $0x1f0] sm:$0xff]
    %v1696 = vld [vmem:[#allocation6 + $0x1f8] sm:$0xff]
    %v1697 = vld [vmem:[%s8] sm:$0xff]
    %v1699 = vperm.slane %v1697, 0
    %v1700 = vperm.slane %v1697, 1
    %v1701 = vperm.slane %v1697, 2
    %v1702 = vperm.slane %v1697, 3
    %v1703 = vperm.slane %v1697, 4
    %v1704 = vperm.slane %v1697, 5
    %v1705 = vperm.slane %v1697, 6
    %v1706 = vperm.slane %v1697, 7
    %v1779 = vunpack.c.l.b16 %v1633
    %v1780 = vunpack.c.h.b16 %v1633
    %v1781 = vunpack.c.l.b16 %v1634
    %v1782 = vunpack.c.h.b16 %v1634
    %v1783 = vunpack.c.l.b16 %v1635
    %v1784 = vunpack.c.h.b16 %v1635
    %v1785 = vunpack.c.l.b16 %v1636
    %v1786 = vunpack.c.h.b16 %v1636
    %v1787 = vunpack.c.l.b16 %v1637
    %v1788 = vunpack.c.h.b16 %v1637
    %v1789 = vunpack.c.l.b16 %v1638
    %v1790 = vunpack.c.h.b16 %v1638
    %v1791 = vunpack.c.l.b16 %v1639
    %v1792 = vunpack.c.h.b16 %v1639
    %v1793 = vunpack.c.l.b16 %v1640
    %v1794 = vunpack.c.h.b16 %v1640
    %v1795 = vunpack.c.l.b16 %v1641
    %v1796 = vunpack.c.h.b16 %v1641
    %v1797 = vunpack.c.l.b16 %v1642
    %v1798 = vunpack.c.h.b16 %v1642
    %v1799 = vunpack.c.l.b16 %v1643
    %v1800 = vunpack.c.h.b16 %v1643
    %v1801 = vunpack.c.l.b16 %v1644
    %v1802 = vunpack.c.h.b16 %v1644
    %v1803 = vunpack.c.l.b16 %v1645
    %v1804 = vunpack.c.h.b16 %v1645
    %v1805 = vunpack.c.l.b16 %v1646
    %v1806 = vunpack.c.h.b16 %v1646
    %v1807 = vunpack.c.l.b16 %v1647
    %v1808 = vunpack.c.h.b16 %v1647
    %v1809 = vunpack.c.l.b16 %v1648
    %v1810 = vunpack.c.h.b16 %v1648
    %v1811 = vunpack.c.l.b16 %v1649
    %v1812 = vunpack.c.h.b16 %v1649
    %v1813 = vunpack.c.l.b16 %v1650
    %v1814 = vunpack.c.h.b16 %v1650
    %v1815 = vunpack.c.l.b16 %v1651
    %v1816 = vunpack.c.h.b16 %v1651
    %v1817 = vunpack.c.l.b16 %v1652
    %v1818 = vunpack.c.h.b16 %v1652
    %v1819 = vunpack.c.l.b16 %v1653
    %v1820 = vunpack.c.h.b16 %v1653
    %v1821 = vunpack.c.l.b16 %v1654
    %v1822 = vunpack.c.h.b16 %v1654
    %v1823 = vunpack.c.l.b16 %v1655
    %v1824 = vunpack.c.h.b16 %v1655
    %v1825 = vunpack.c.l.b16 %v1656
    %v1826 = vunpack.c.h.b16 %v1656
    %v1827 = vunpack.c.l.b16 %v1657
    %v1828 = vunpack.c.h.b16 %v1657
    %v1829 = vunpack.c.l.b16 %v1658
    %v1830 = vunpack.c.h.b16 %v1658
    %v1831 = vunpack.c.l.b16 %v1659
    %v1832 = vunpack.c.h.b16 %v1659
    %v1833 = vunpack.c.l.b16 %v1660
    %v1834 = vunpack.c.h.b16 %v1660
    %v1835 = vunpack.c.l.b16 %v1661
    %v1836 = vunpack.c.h.b16 %v1661
    %v1837 = vunpack.c.l.b16 %v1662
    %v1838 = vunpack.c.h.b16 %v1662
    %v1839 = vunpack.c.l.b16 %v1663
    %v1840 = vunpack.c.h.b16 %v1663
    %v1841 = vunpack.c.l.b16 %v1664
    %v1842 = vunpack.c.h.b16 %v1664
    %v1843 = vunpack.c.l.b16 %v1665
    %v1844 = vunpack.c.h.b16 %v1665
    %v1845 = vunpack.c.l.b16 %v1666
    %v1846 = vunpack.c.h.b16 %v1666
    %v1847 = vunpack.c.l.b16 %v1667
    %v1848 = vunpack.c.h.b16 %v1667
    %v1849 = vunpack.c.l.b16 %v1668
    %v1850 = vunpack.c.h.b16 %v1668
    %v1851 = vunpack.c.l.b16 %v1669
    %v1852 = vunpack.c.h.b16 %v1669
    %v1853 = vunpack.c.l.b16 %v1670
    %v1854 = vunpack.c.h.b16 %v1670
    %v1855 = vunpack.c.l.b16 %v1671
    %v1856 = vunpack.c.h.b16 %v1671
    %v1857 = vunpack.c.l.b16 %v1672
    %v1858 = vunpack.c.h.b16 %v1672
    %v1859 = vunpack.c.l.b16 %v1673
    %v1860 = vunpack.c.h.b16 %v1673
    %v1861 = vunpack.c.l.b16 %v1674
    %v1862 = vunpack.c.h.b16 %v1674
    %v1863 = vunpack.c.l.b16 %v1675
    %v1864 = vunpack.c.h.b16 %v1675
    %v1865 = vunpack.c.l.b16 %v1676
    %v1866 = vunpack.c.h.b16 %v1676
    %v1867 = vunpack.c.l.b16 %v1677
    %v1868 = vunpack.c.h.b16 %v1677
    %v1869 = vunpack.c.l.b16 %v1678
    %v1870 = vunpack.c.h.b16 %v1678
    %v1871 = vunpack.c.l.b16 %v1679
    %v1872 = vunpack.c.h.b16 %v1679
    %v1873 = vunpack.c.l.b16 %v1680
    %v1874 = vunpack.c.h.b16 %v1680
    %v1875 = vunpack.c.l.b16 %v1681
    %v1876 = vunpack.c.h.b16 %v1681
    %v1877 = vunpack.c.l.b16 %v1682
    %v1878 = vunpack.c.h.b16 %v1682
    %v1879 = vunpack.c.l.b16 %v1683
    %v1880 = vunpack.c.h.b16 %v1683
    %v1881 = vunpack.c.l.b16 %v1684
    %v1882 = vunpack.c.h.b16 %v1684
    %v1883 = vunpack.c.l.b16 %v1685
    %v1884 = vunpack.c.h.b16 %v1685
    %v1885 = vunpack.c.l.b16 %v1686
    %v1886 = vunpack.c.h.b16 %v1686
    %v1887 = vunpack.c.l.b16 %v1687
    %v1888 = vunpack.c.h.b16 %v1687
    %v1889 = vunpack.c.l.b16 %v1688
    %v1890 = vunpack.c.h.b16 %v1688
    %v1891 = vunpack.c.l.b16 %v1689
    %v1892 = vunpack.c.h.b16 %v1689
    %v1893 = vunpack.c.l.b16 %v1690
    %v1894 = vunpack.c.h.b16 %v1690
    %v1895 = vunpack.c.l.b16 %v1691
    %v1896 = vunpack.c.h.b16 %v1691
    %v1897 = vunpack.c.l.b16 %v1692
    %v1898 = vunpack.c.h.b16 %v1692
    %v1899 = vunpack.c.l.b16 %v1693
    %v1900 = vunpack.c.h.b16 %v1693
    %v1901 = vunpack.c.l.b16 %v1694
    %v1902 = vunpack.c.h.b16 %v1694
    %v1903 = vunpack.c.l.b16 %v1695
    %v1904 = vunpack.c.h.b16 %v1695
    %v1905 = vunpack.c.l.b16 %v1696
    %v1906 = vunpack.c.h.b16 %v1696
    %v1907 = vpack.c.b16 %v1787, %v1779
    %v1908 = vpack.c.b16 %v1788, %v1780
    %v1909 = vpack.c.b16 %v1789, %v1781
    %v1910 = vpack.c.b16 %v1790, %v1782
    %v1911 = vpack.c.b16 %v1791, %v1783
    %v1912 = vpack.c.b16 %v1792, %v1784
    %v1913 = vpack.c.b16 %v1793, %v1785
    %v1914 = vpack.c.b16 %v1794, %v1786
    %v1915 = vpack.c.b16 %v1803, %v1795
    %v1916 = vpack.c.b16 %v1804, %v1796
    %v1917 = vpack.c.b16 %v1805, %v1797
    %v1918 = vpack.c.b16 %v1806, %v1798
    %v1919 = vpack.c.b16 %v1807, %v1799
    %v1920 = vpack.c.b16 %v1808, %v1800
    %v1921 = vpack.c.b16 %v1809, %v1801
    %v1922 = vpack.c.b16 %v1810, %v1802
    %v1923 = vpack.c.b16 %v1819, %v1811
    %v1924 = vpack.c.b16 %v1820, %v1812
    %v1925 = vpack.c.b16 %v1821, %v1813
    %v1926 = vpack.c.b16 %v1822, %v1814
    %v1927 = vpack.c.b16 %v1823, %v1815
    %v1928 = vpack.c.b16 %v1824, %v1816
    %v1929 = vpack.c.b16 %v1825, %v1817
    %v1930 = vpack.c.b16 %v1826, %v1818
    %v1931 = vpack.c.b16 %v1835, %v1827
    %v1932 = vpack.c.b16 %v1836, %v1828
    %v1933 = vpack.c.b16 %v1837, %v1829
    %v1934 = vpack.c.b16 %v1838, %v1830
    %v1935 = vpack.c.b16 %v1839, %v1831
    %v1936 = vpack.c.b16 %v1840, %v1832
    %v1937 = vpack.c.b16 %v1841, %v1833
    %v1938 = vpack.c.b16 %v1842, %v1834
    %v1939 = vpack.c.b16 %v1851, %v1843
    %v1940 = vpack.c.b16 %v1852, %v1844
    %v1941 = vpack.c.b16 %v1853, %v1845
    %v1942 = vpack.c.b16 %v1854, %v1846
    %v1943 = vpack.c.b16 %v1855, %v1847
    %v1944 = vpack.c.b16 %v1856, %v1848
    %v1945 = vpack.c.b16 %v1857, %v1849
    %v1946 = vpack.c.b16 %v1858, %v1850
    %v1947 = vpack.c.b16 %v1867, %v1859
    %v1948 = vpack.c.b16 %v1868, %v1860
    %v1949 = vpack.c.b16 %v1869, %v1861
    %v1950 = vpack.c.b16 %v1870, %v1862
    %v1951 = vpack.c.b16 %v1871, %v1863
    %v1952 = vpack.c.b16 %v1872, %v1864
    %v1953 = vpack.c.b16 %v1873, %v1865
    %v1954 = vpack.c.b16 %v1874, %v1866
    %v1955 = vpack.c.b16 %v1883, %v1875
    %v1956 = vpack.c.b16 %v1884, %v1876
    %v1957 = vpack.c.b16 %v1885, %v1877
    %v1958 = vpack.c.b16 %v1886, %v1878
    %v1959 = vpack.c.b16 %v1887, %v1879
    %v1960 = vpack.c.b16 %v1888, %v1880
    %v1961 = vpack.c.b16 %v1889, %v1881
    %v1962 = vpack.c.b16 %v1890, %v1882
    %v1963 = vpack.c.b16 %v1899, %v1891
    %v1964 = vpack.c.b16 %v1900, %v1892
    %v1965 = vpack.c.b16 %v1901, %v1893
    %v1966 = vpack.c.b16 %v1902, %v1894
    %v1967 = vpack.c.b16 %v1903, %v1895
    %v1968 = vpack.c.b16 %v1904, %v1896
    %v1969 = vpack.c.b16 %v1905, %v1897
    %v1970 = vpack.c.b16 %v1906, %v1898
    %2035 = vmatpush.bf16.msra.mxu0 %v1963
    %2036 = vmatpush.bf16.msra.mxu0 %v1955
    %2037 = vmatpush.bf16.msra.mxu0 %v1947
    %2038 = vmatpush.bf16.msra.mxu0 %v1939
    %2039 = vmatpush.bf16.msra.mxu0 %v1931
    %2040 = vmatpush.bf16.msra.mxu0 %v1923
    %2041 = vmatpush.bf16.msra.mxu0 %v1915
    %2042 = vmatpush.bf16.msra.mxu0 %v1907
    %2043 = vmatmul.bf16.gmra.mxu0 %v1118
    %v2044 = vpop.f32.mrf.mxu0
    %v2045 = vadd.f32 %v1699, %v2044
    %v2046 = vpop.f32.mrf.mxu0
    %v2047 = vadd.f32 %v1699, %v2046
    %2048 = vdwg.mxu0
    %2049 = vmatpush.bf16.msra.mxu0 %v1964
    %2050 = vmatpush.bf16.msra.mxu0 %v1956
    %2051 = vmatpush.bf16.msra.mxu0 %v1948
    %2052 = vmatpush.bf16.msra.mxu0 %v1940
    %2053 = vmatpush.bf16.msra.mxu0 %v1932
    %2054 = vmatpush.bf16.msra.mxu0 %v1924
    %2055 = vmatpush.bf16.msra.mxu0 %v1916
    %2056 = vmatpush.bf16.msra.mxu0 %v1908
    %2057 = vmatmul.bf16.gmra.mxu0 %v1118
    %v2058 = vpop.f32.mrf.mxu0
    %v2059 = vadd.f32 %v1700, %v2058
    %v2060 = vpop.f32.mrf.mxu0
    %v2061 = vadd.f32 %v1700, %v2060
    %2062 = vdwg.mxu0
    %2063 = vmatpush.bf16.msra.mxu0 %v1965
    %2064 = vmatpush.bf16.msra.mxu0 %v1957
    %2065 = vmatpush.bf16.msra.mxu0 %v1949
    %2066 = vmatpush.bf16.msra.mxu0 %v1941
    %2067 = vmatpush.bf16.msra.mxu0 %v1933
    %2068 = vmatpush.bf16.msra.mxu0 %v1925
    %2069 = vmatpush.bf16.msra.mxu0 %v1917
    %2070 = vmatpush.bf16.msra.mxu0 %v1909
    %2071 = vmatmul.bf16.gmra.mxu0 %v1118
    %v2072 = vpop.f32.mrf.mxu0
    %v2073 = vadd.f32 %v1701, %v2072
    %v2074 = vpop.f32.mrf.mxu0
    %v2075 = vadd.f32 %v1701, %v2074
    %2076 = vdwg.mxu0
    %2077 = vmatpush.bf16.msra.mxu0 %v1966
    %2078 = vmatpush.bf16.msra.mxu0 %v1958
    %2079 = vmatpush.bf16.msra.mxu0 %v1950
    %2080 = vmatpush.bf16.msra.mxu0 %v1942
    %2081 = vmatpush.bf16.msra.mxu0 %v1934
    %2082 = vmatpush.bf16.msra.mxu0 %v1926
    %2083 = vmatpush.bf16.msra.mxu0 %v1918
    %2084 = vmatpush.bf16.msra.mxu0 %v1910
    %2085 = vmatmul.bf16.gmra.mxu0 %v1118
    %v2086 = vpop.f32.mrf.mxu0
    %v2087 = vadd.f32 %v1702, %v2086
    %v2088 = vpop.f32.mrf.mxu0
    %v2089 = vadd.f32 %v1702, %v2088
    %2090 = vdwg.mxu0
    %2091 = vmatpush.bf16.msra.mxu0 %v1967
    %2092 = vmatpush.bf16.msra.mxu0 %v1959
    %2093 = vmatpush.bf16.msra.mxu0 %v1951
    %2094 = vmatpush.bf16.msra.mxu0 %v1943
    %2095 = vmatpush.bf16.msra.mxu0 %v1935
    %2096 = vmatpush.bf16.msra.mxu0 %v1927
    %2097 = vmatpush.bf16.msra.mxu0 %v1919
    %2098 = vmatpush.bf16.msra.mxu0 %v1911
    %2099 = vmatmul.bf16.gmra.mxu0 %v1118
    %v2100 = vpop.f32.mrf.mxu0
    %v2101 = vadd.f32 %v1703, %v2100
    %v2102 = vpop.f32.mrf.mxu0
    %v2103 = vadd.f32 %v1703, %v2102
    %2104 = vdwg.mxu0
    %2105 = vmatpush.bf16.msra.mxu0 %v1968
    %2106 = vmatpush.bf16.msra.mxu0 %v1960
    %2107 = vmatpush.bf16.msra.mxu0 %v1952
    %2108 = vmatpush.bf16.msra.mxu0 %v1944
    %2109 = vmatpush.bf16.msra.mxu0 %v1936
    %2110 = vmatpush.bf16.msra.mxu0 %v1928
    %2111 = vmatpush.bf16.msra.mxu0 %v1920
    %2112 = vmatpush.bf16.msra.mxu0 %v1912
    %2113 = vmatmul.bf16.gmra.mxu0 %v1118
    %v2114 = vpop.f32.mrf.mxu0
    %v2115 = vadd.f32 %v1704, %v2114
    %v2116 = vpop.f32.mrf.mxu0
    %v2117 = vadd.f32 %v1704, %v2116
    %2118 = vdwg.mxu0
    %2119 = vmatpush.bf16.msra.mxu0 %v1969
    %2120 = vmatpush.bf16.msra.mxu0 %v1961
    %2121 = vmatpush.bf16.msra.mxu0 %v1953
    %2122 = vmatpush.bf16.msra.mxu0 %v1945
    %2123 = vmatpush.bf16.msra.mxu0 %v1937
    %2124 = vmatpush.bf16.msra.mxu0 %v1929
    %2125 = vmatpush.bf16.msra.mxu0 %v1921
    %2126 = vmatpush.bf16.msra.mxu0 %v1913
    %2127 = vmatmul.bf16.gmra.mxu0 %v1118
    %v2128 = vpop.f32.mrf.mxu0
    %v2129 = vadd.f32 %v1705, %v2128
    %v2130 = vpop.f32.mrf.mxu0
    %v2131 = vadd.f32 %v1705, %v2130
    %2132 = vdwg.mxu0
    %2133 = vmatpush.bf16.msra.mxu0 %v1970
    %2134 = vmatpush.bf16.msra.mxu0 %v1962
    %2135 = vmatpush.bf16.msra.mxu0 %v1954
    %2136 = vmatpush.bf16.msra.mxu0 %v1946
    %2137 = vmatpush.bf16.msra.mxu0 %v1938
    %2138 = vmatpush.bf16.msra.mxu0 %v1930
    %2139 = vmatpush.bf16.msra.mxu0 %v1922
    %2140 = vmatpush.bf16.msra.mxu0 %v1914
    %2141 = vmatmul.bf16.gmra.mxu0 %v1118
    %v2142 = vpop.f32.mrf.mxu0
    %v2143 = vadd.f32 %v1706, %v2142
    %v2144 = vpop.f32.mrf.mxu0
    %v2145 = vadd.f32 %v1706, %v2144
    %2146 = vdwg.mxu0
    %v2147 = vmul.f32 %v2045, 1.442695
    %v2148 = vpow.pop %v2147
    %v2149 = vmul.f32 %v2059, 1.442695
    %v2150 = vpow.pop %v2149
    %v2151 = vmul.f32 %v2073, 1.442695
    %v2152 = vpow.pop %v2151
    %v2153 = vmul.f32 %v2087, 1.442695
    %v2154 = vpow.pop %v2153
    %v2155 = vmul.f32 %v2101, 1.442695
    %v2156 = vpow.pop %v2155
    %v2157 = vmul.f32 %v2115, 1.442695
    %v2158 = vpow.pop %v2157
    %v2159 = vmul.f32 %v2129, 1.442695
    %v2160 = vpow.pop %v2159
    %v2161 = vmul.f32 %v2143, 1.442695
    %v2162 = vpow.pop %v2161
    %v2163 = vmul.f32 %v2047, 1.442695
    %v2164 = vpow.pop %v2163
    %v2165 = vmul.f32 %v2061, 1.442695
    %v2166 = vpow.pop %v2165
    %v2167 = vmul.f32 %v2075, 1.442695
    %v2168 = vpow.pop %v2167
    %v2169 = vmul.f32 %v2089, 1.442695
    %v2170 = vpow.pop %v2169
    %v2171 = vmul.f32 %v2103, 1.442695
    %v2172 = vpow.pop %v2171
    %v2173 = vmul.f32 %v2117, 1.442695
    %v2174 = vpow.pop %v2173
    %v2175 = vmul.f32 %v2131, 1.442695
    %v2176 = vpow.pop %v2175
    %v2177 = vmul.f32 %v2145, 1.442695
    %v2178 = vpow.pop %v2177
    %v2179 = vld [vmem:[%s2] sm:$0xff]
    %v2180 = vld [vmem:[%s2 + $0x8] sm:$0xff]
    %v2181 = vld [vmem:[%s2 + $0x10] sm:$0xff]
    %v2182 = vld [vmem:[%s2 + $0x18] sm:$0xff]
    %v2183 = vld [vmem:[%s2 + $0x20] sm:$0xff]
    %v2184 = vld [vmem:[%s2 + $0x28] sm:$0xff]
    %v2185 = vld [vmem:[%s2 + $0x30] sm:$0xff]
    %v2186 = vld [vmem:[%s2 + $0x38] sm:$0xff]
    %v2187 = vld [vmem:[%s2 + $0x40] sm:$0xff]
    %v2188 = vld [vmem:[%s2 + $0x48] sm:$0xff]
    %v2189 = vld [vmem:[%s2 + $0x50] sm:$0xff]
    %v2190 = vld [vmem:[%s2 + $0x58] sm:$0xff]
    %v2191 = vld [vmem:[%s2 + $0x60] sm:$0xff]
    %v2192 = vld [vmem:[%s2 + $0x68] sm:$0xff]
    %v2193 = vld [vmem:[%s2 + $0x70] sm:$0xff]
    %v2194 = vld [vmem:[%s2 + $0x78] sm:$0xff]
    %v2195 = vmul.f32 %v2148, %v2179
    %v2196 = vmul.f32 %v2150, %v2180
    %v2197 = vmul.f32 %v2152, %v2181
    %v2198 = vmul.f32 %v2154, %v2182
    %v2199 = vmul.f32 %v2156, %v2183
    %v2200 = vmul.f32 %v2158, %v2184
    %v2201 = vmul.f32 %v2160, %v2185
    %v2202 = vmul.f32 %v2162, %v2186
    %v2203 = vmul.f32 %v2164, %v2187
    %v2204 = vmul.f32 %v2166, %v2188
    %v2205 = vmul.f32 %v2168, %v2189
    %v2206 = vmul.f32 %v2170, %v2190
    %v2207 = vmul.f32 %v2172, %v2191
    %v2208 = vmul.f32 %v2174, %v2192
    %v2209 = vmul.f32 %v2176, %v2193
    %v2210 = vmul.f32 %v2178, %v2194
    %v2211 = vadd.f32 %v1531, %v2195
    %v2212 = vadd.f32 %v1545, %v2196
    %v2213 = vadd.f32 %v1559, %v2197
    %v2214 = vadd.f32 %v1573, %v2198
    %v2215 = vadd.f32 %v1587, %v2199
    %v2216 = vadd.f32 %v1601, %v2200
    %v2217 = vadd.f32 %v1615, %v2201
    %v2218 = vadd.f32 %v1629, %v2202
    %v2219 = vadd.f32 %v1533, %v2203
    %v2220 = vadd.f32 %v1547, %v2204
    %v2221 = vadd.f32 %v1561, %v2205
    %v2222 = vadd.f32 %v1575, %v2206
    %v2223 = vadd.f32 %v1589, %v2207
    %v2224 = vadd.f32 %v1603, %v2208
    %v2225 = vadd.f32 %v1617, %v2209
    %v2226 = vadd.f32 %v1631, %v2210
    %2227 = vst [vmem:[%s9] sm:$0xff] %v2211
    %2228 = vst [vmem:[%s9 + $0x8] sm:$0xff] %v2212
    %2229 = vst [vmem:[%s9 + $0x10] sm:$0xff] %v2213
    %2230 = vst [vmem:[%s9 + $0x18] sm:$0xff] %v2214
    %2231 = vst [vmem:[%s9 + $0x20] sm:$0xff] %v2215
    %2232 = vst [vmem:[%s9 + $0x28] sm:$0xff] %v2216
    %2233 = vst [vmem:[%s9 + $0x30] sm:$0xff] %v2217
    %2234 = vst [vmem:[%s9 + $0x38] sm:$0xff] %v2218
    %2235 = vst [vmem:[%s9 + $0x40] sm:$0xff] %v2219
    %2236 = vst [vmem:[%s9 + $0x48] sm:$0xff] %v2220
    %2237 = vst [vmem:[%s9 + $0x50] sm:$0xff] %v2221
    %2238 = vst [vmem:[%s9 + $0x58] sm:$0xff] %v2222
    %2239 = vst [vmem:[%s9 + $0x60] sm:$0xff] %v2223
    %2240 = vst [vmem:[%s9 + $0x68] sm:$0xff] %v2224
    %2241 = vst [vmem:[%s9 + $0x70] sm:$0xff] %v2225
    %2242 = vst [vmem:[%s9 + $0x78] sm:$0xff] %v2226
    %2243 = vst [vmem:[%s10] sm:$0xff] %v1531
    %2244 = vst [vmem:[%s10 + $0x8] sm:$0xff] %v1545
    %2245 = vst [vmem:[%s10 + $0x10] sm:$0xff] %v1559
    %2246 = vst [vmem:[%s10 + $0x18] sm:$0xff] %v1573
    %2247 = vst [vmem:[%s10 + $0x20] sm:$0xff] %v1587
    %2248 = vst [vmem:[%s10 + $0x28] sm:$0xff] %v1601
    %2249 = vst [vmem:[%s10 + $0x30] sm:$0xff] %v1615
    %2250 = vst [vmem:[%s10 + $0x38] sm:$0xff] %v1629
    %2251 = vst [vmem:[%s10 + $0x40] sm:$0xff] %v1533
    %2252 = vst [vmem:[%s10 + $0x48] sm:$0xff] %v1547
    %2253 = vst [vmem:[%s10 + $0x50] sm:$0xff] %v1561
    %2254 = vst [vmem:[%s10 + $0x58] sm:$0xff] %v1575
    %2255 = vst [vmem:[%s10 + $0x60] sm:$0xff] %v1589
    %2256 = vst [vmem:[%s10 + $0x68] sm:$0xff] %v1603
    %2257 = vst [vmem:[%s10 + $0x70] sm:$0xff] %v1617
    %2258 = vst [vmem:[%s10 + $0x78] sm:$0xff] %v1631
    %2259 = vst [vmem:[%s11] sm:$0xff] %v2045
    %2260 = vst [vmem:[%s11 + $0x8] sm:$0xff] %v2059
    %2261 = vst [vmem:[%s11 + $0x10] sm:$0xff] %v2073
    %2262 = vst [vmem:[%s11 + $0x18] sm:$0xff] %v2087
    %2263 = vst [vmem:[%s11 + $0x20] sm:$0xff] %v2101
    %2264 = vst [vmem:[%s11 + $0x28] sm:$0xff] %v2115
    %2265 = vst [vmem:[%s11 + $0x30] sm:$0xff] %v2129
    %2266 = vst [vmem:[%s11 + $0x38] sm:$0xff] %v2143
    %2267 = vst [vmem:[%s11 + $0x40] sm:$0xff] %v2047
    %2268 = vst [vmem:[%s11 + $0x48] sm:$0xff] %v2061
    %2269 = vst [vmem:[%s11 + $0x50] sm:$0xff] %v2075
    %2270 = vst [vmem:[%s11 + $0x58] sm:$0xff] %v2089
    %2271 = vst [vmem:[%s11 + $0x60] sm:$0xff] %v2103
    %2272 = vst [vmem:[%s11 + $0x68] sm:$0xff] %v2117
    %2273 = vst [vmem:[%s11 + $0x70] sm:$0xff] %v2131
    %2274 = vst [vmem:[%s11 + $0x78] sm:$0xff] %v2145
    %2275 = vst [vmem:[%s12] sm:$0xff] %v992
    %2276 = vst [vmem:[%s12 + $0x8] sm:$0xff] %v994
    %2277 = vst [vmem:[%s13] sm:$0xff] %v1104
    %2278 = vst [vmem:[%s13 + $0x8] sm:$0xff] %v1106
    %2279 = vst [vmem:[%s14] sm:$0xff] %v1116
    %2280 = vst [vmem:[%s14 + $0x8] sm:$0xff] %v1117
    %v2281 = vsub.f32 %v2211, %v86
    %v2282 = vsub.f32 %v2212, %v87
    %v2283 = vsub.f32 %v2213, %v88
    %v2284 = vsub.f32 %v2214, %v89
    %v2285 = vsub.f32 %v2215, %v90
    %v2286 = vsub.f32 %v2216, %v91
    %v2287 = vsub.f32 %v2217, %v92
    %v2288 = vsub.f32 %v2218, %v93
    %v2289 = vsub.f32 %v2219, %v94
    %v2290 = vsub.f32 %v2220, %v95
    %v2291 = vsub.f32 %v2221, %v96
    %v2292 = vsub.f32 %v2222, %v97
    %v2293 = vsub.f32 %v2223, %v98
    %v2294 = vsub.f32 %v2224, %v99
    %v2295 = vsub.f32 %v2225, %v100
    %v2296 = vsub.f32 %v2226, %v101
    %v2297 = vmul.f32 %v2281, %v2281
    %v2298 = vmul.f32 %v2282, %v2282
    %v2299 = vmul.f32 %v2283, %v2283
    %v2300 = vmul.f32 %v2284, %v2284
    %v2301 = vmul.f32 %v2285, %v2285
    %v2302 = vmul.f32 %v2286, %v2286
    %v2303 = vmul.f32 %v2287, %v2287
    %v2304 = vmul.f32 %v2288, %v2288
    %v2305 = vmul.f32 %v2289, %v2289
    %v2306 = vmul.f32 %v2290, %v2290
    %v2307 = vmul.f32 %v2291, %v2291
    %v2308 = vmul.f32 %v2292, %v2292
    %v2309 = vmul.f32 %v2293, %v2293
    %v2310 = vmul.f32 %v2294, %v2294
    %v2311 = vmul.f32 %v2295, %v2295
    %v2312 = vmul.f32 %v2296, %v2296
    %v2313 = vadd.f32 %v2297, %v2298
    %v2314 = vadd.f32 %v2313, %v2299
    %v2315 = vadd.f32 %v2314, %v2300
    %v2316 = vadd.f32 %v2315, %v2301
    %v2317 = vadd.f32 %v2316, %v2302
    %v2318 = vadd.f32 %v2317, %v2303
    %v2319 = vadd.f32 %v2318, %v2304
    %2320 = vadd.xlane.f32.xlu0 %v2319
    %v2321 = vpop.xlane.xlu0 %2320
    %v2322 = vadd.f32 %v2305, %v2306
    %v2323 = vadd.f32 %v2322, %v2307
    %v2324 = vadd.f32 %v2323, %v2308
    %v2325 = vadd.f32 %v2324, %v2309
    %v2326 = vadd.f32 %v2325, %v2310
    %v2327 = vadd.f32 %v2326, %v2311
    %v2328 = vadd.f32 %v2327, %v2312
    %2329 = vadd.xlane.f32.xlu0 %v2328
    %v2330 = vpop.xlane.xlu0 %2329
    %v2331 = vsub.f32 0.0, %v2321
    %v2332 = vsub.f32 0.0, %v2330
    %v2333 = vmul.f32 %v1116, 0.5
    %v2334 = vmul.f32 %v1117, 0.5
    %v2335 = vmul.f32 %v2333, %v1116
    %v2336 = vmul.f32 %v2334, %v1117
    %v2337 = vmul.f32 %v1108, 0.5
    %v2338 = vmul.f32 %v1109, 0.5
    %v2339 = vmul.f32 %v2337, %v1108
    %v2340 = vmul.f32 %v2338, %v1109
    %v2341 = vsub.f32 %v2335, %v2339
    %v2342 = vsub.f32 %v2336, %v2340
    %v2343 = vsub.f32 %v2341, %v1104
    %v2344 = vsub.f32 %v2342, %v1106
    %2345 = vadd.xlane.f32.xlu0 %v2343
    %v2346 = vpop.xlane.xlu0 %2345
    %2347 = vadd.xlane.f32.xlu0 %v2344
    %v2348 = vpop.xlane.xlu0 %2347
    %v2349 = vsub.f32 %v2331, %v2346
    %v2350 = vsub.f32 %v2332, %v2348
    %v2351 = vlaneseq
    %v2352 = vand.u32 %v2351, 127
    %vm2353 = vcmp.eq.s32.totalorder %v2352, 0
    %vm2354 = vcmp.eq.s32.totalorder %v2352, 1
    %vm2355 = vcmp.eq.s32.totalorder %v2352, 2
    %v2356 = vsel %vm2355, %v2346, 0.0
    %v2357 = vsel %vm2355, %v2348, 0.0
    %v2358 = vsel %vm2354, %v2331, %v2356
    %v2359 = vsel %vm2354, %v2332, %v2357
    %v2360 = vsel %vm2353, %v2349, %v2358
    %v2361 = vsel %vm2353, %v2350, %v2359
    %2362 = vst [vmem:[%s15] sm:$0xff] %v2360
    %2363 = vst [vmem:[%s15 + $0x8] sm:$0xff] %v2361
    // Predicated region
    $region50: #{variational_inference.3} parent=1 // pred_check
      _
    $region51: #{variational_inference.3} parent=1 // pred_check_branch
      %2365 = sbr.rel (0) target = $region53
    $region52: #{variational_inference.3} parent=1 // pred_region
      _
    $region53: #{variational_inference.3} parent=1 // pred_fallthru
      _
    // Predicated region
    $region54: #{variational_inference.3} parent=1 // pred_check
      _
    $region55: #{variational_inference.3} parent=1 // pred_check_branch
      %2367 = sbr.rel (0) target = $region57
    $region56: #{variational_inference.3} parent=1 // pred_region
      _
    $region57: #{variational_inference.3} parent=1 // pred_fallthru
      _
    // Predicated region
    $region58: #{variational_inference.3} parent=1 // pred_check
      _
    $region59: #{variational_inference.3} parent=1 // pred_check_branch
      %2369 = sbr.rel (0) target = $region61
    $region60: #{variational_inference.3} parent=1 // pred_region
      _
    $region61: #{variational_inference.3} parent=1 // pred_fallthru
      _
    // Predicated region
    $region62: #{variational_inference.3} parent=1 // pred_check
      _
    $region63: #{variational_inference.3} parent=1 // pred_check_branch
      %2371 = sbr.rel (0) target = $region65
    $region64: #{variational_inference.3} parent=1 // pred_region
      _
    $region65: #{variational_inference.3} parent=1 // pred_fallthru
      _
    // Predicated region
    $region66: #{variational_inference.3} parent=1 // pred_check
      _
    $region67: #{variational_inference.3} parent=1 // pred_check_branch
      %2373 = sbr.rel (0) target = $region69
    $region68: #{variational_inference.3} parent=1 // pred_region
      _
    $region69: #{variational_inference.3} parent=1 // pred_fallthru
      _
    // Predicated region
    $region70: #{variational_inference.3} parent=1 // pred_check
      _
    $region71: #{variational_inference.3} parent=1 // pred_check_branch
      %2375 = sbr.rel (0) target = $region73
    $region72: #{variational_inference.3} parent=1 // pred_region
      _
    $region73: #{variational_inference.3} parent=1 // pred_fallthru
      _
    // Predicated region
    $region74: #{variational_inference.3} parent=1 // pred_check
      _
    $region75: #{variational_inference.3} parent=1 // pred_check_branch
      %2377 = sbr.rel (0) target = $region77
    $region76: #{variational_inference.3} parent=1 // pred_region
      _
    $region77: #{variational_inference.3} parent=1 // pred_fallthru
      _
    // Predicated region
    $region78: #{variational_inference.3} parent=1 // pred_check
      _
    $region79: #{variational_inference.3} parent=1 // pred_check_branch
      %2379 = sbr.rel (0) target = $region81
    $region80: #{variational_inference.3} parent=1 // pred_region
      _
    $region81: #{variational_inference.3} parent=1 // pred_fallthru
      _
    // Predicated region
    $region82: #{variational_inference.3} parent=1 // pred_check
      _
    $region83: #{variational_inference.3} parent=1 // pred_check_branch
      %2381 = sbr.rel (0) target = $region85
    $region84: #{variational_inference.3} parent=1 // pred_region
      _
    $region85: #{variational_inference.3} parent=1 // pred_fallthru
      _
    // Predicated region
    $region86: #{variational_inference.3} parent=1 // pred_check
      _
    $region87: #{variational_inference.3} parent=1 // pred_check_branch
      %2383 = sbr.rel (0) target = $region89
    $region88: #{variational_inference.3} parent=1 // pred_region
      _
    $region89: #{variational_inference.3} parent=1 // pred_fallthru
      _
    // Predicated region
    $region90: #{variational_inference.3} parent=1 // pred_check
      _
    $region91: #{variational_inference.3} parent=1 // pred_check_branch
      %2385 = sbr.rel (0) target = $region93
    $region92: #{variational_inference.3} parent=1 // pred_region
      _
    $region93: #{variational_inference.3} parent=1 // pred_fallthru
      _
    // Predicated region
    $region94: #{variational_inference.3} parent=1 // pred_check
      _
    $region95: #{variational_inference.3} parent=1 // pred_check_branch
      %2387 = sbr.rel (0) target = $region97
    $region96: #{variational_inference.3} parent=1 // pred_region
      _
    $region97: #{variational_inference.3} parent=1 // pred_fallthru
      _
    // Predicated region
    $region98: #{variational_inference.3} parent=1 // pred_check
      _
    $region99: #{variational_inference.3} parent=1 // pred_check_branch
      %2389 = sbr.rel (0) target = $region101
    $region100: #{variational_inference.3} parent=1 // pred_region
      _
    $region101: #{variational_inference.3} parent=1 // pred_fallthru
      _
    // Predicated region
    $region102: #{variational_inference.3} parent=1 // pred_check
      _
    $region103: #{variational_inference.3} parent=1 // pred_check_branch
      %2391 = sbr.rel (0) target = $region105
    $region104: #{variational_inference.3} parent=1 // pred_region
      _
    $region105: #{variational_inference.3} parent=1 // pred_fallthru
      _
    %2392 = vsyncpa [#allocation3], 1
    %2393 = vsyncpa [#allocation5], 1

</llo_original>
